<compile_context>
chip_gen: v7x
topology: tpu7x:2x2x1
jax: 0.10.0
libtpu: 0.0.40
codegen_flags: <defaults>
</compile_context>

<pallas_src>
import numpy as np
import jax
import jax.numpy as jnp
from jax.experimental import pallas as pl
from jax.experimental.pallas import tpu as pltpu

WIN_SIZE = 11
WIN_SIGMA = 1.5
DATA_RANGE = 1.0
K1, K2 = 0.01, 0.03
C1 = (K1 * DATA_RANGE) ** 2
C2 = (K2 * DATA_RANGE) ** 2


def _gauss_win(size=WIN_SIZE, sigma=WIN_SIGMA):
    # identical to pytorch_msssim._fspecial_gauss_1d
    coords = np.arange(size, dtype=np.float32) - size // 2
    g = np.exp(-(coords ** 2) / (2.0 * sigma ** 2))
    g = g / g.sum()
    return g.astype(np.float32)


WIN = _gauss_win()


def _band_matrix(dim, win):
    """Band matrix M (dim, dim-win+1) s.t. (img @ M)[:, j] = sum_k img[:, j+k]*win[k]."""
    size = win.shape[0]
    out = dim - size + 1
    m = np.zeros((dim, out), dtype=np.float32)
    for j in range(out):
        m[j:j + size, j] = win
    return m


def _choose_plane_block(num_planes, H, W, vmem_budget_bytes=24 << 20):
    """Largest divisor of num_planes that fits a rough VMEM budget; prefer >=2
    grid steps so the 'parallel' axis can be sharded across TensorCores."""
    per_plane = 96 * H * W  # ~bytes of f32 working set per plane (dbl-buffered inputs + temps)
    cap = max(1, vmem_budget_bytes // per_plane)
    divisors = [d for d in range(1, num_planes + 1) if num_planes % d == 0 and d <= cap]
    if not divisors:
        divisors = [1]
    multi = [d for d in divisors if 2 * d <= num_planes]
    return max(multi) if multi else max(divisors)


def _ssim_loss_kernel(x_ref, y_ref, gw_ref, sse_ref, ssim_ref, nanx_ref, nany_ref):
    x = x_ref[...]            # (B, H, W) f32
    y = y_ref[...]
    B, H, W = x.shape         # static Python ints
    Hout = H - WIN_SIZE + 1

    # ---- NaN counts folded into the kernel (no extra HBM pass, no host sync) ----
    nanx_ref[...] = jnp.sum(jnp.isnan(x).astype(jnp.float32)).reshape(1, 1, 1)
    nany_ref[...] = jnp.sum(jnp.isnan(y).astype(jnp.float32)).reshape(1, 1, 1)

    # ---- MSE partial sum ----
    d = x - y
    sse_ref[...] = jnp.sum(d * d).reshape(1, 1, 1)

    # ---- de-normalize + clamp ----
    dx = jnp.clip((x + 1.0) * 0.5, 0.0, 1.0).reshape(B * H, W)
    dy = jnp.clip((y + 1.0) * 0.5, 0.0, 1.0).reshape(B * H, W)

    # ---- W-direction Gaussian filter: one fused MXU matmul for all 5 maps ----
    stacked = jnp.concatenate([dx, dy, dx * dx, dy * dy, dx * dy], axis=0)  # (5*B*H, W)
    gw = gw_ref[...]                                                        # (W, Wout)
    Wout = gw.shape[1]
    t = jnp.dot(stacked.astype(gw.dtype), gw,
                preferred_element_type=jnp.float32)                         # (5*B*H, Wout)
    t = t.reshape(5 * B, H, Wout)

    # ---- H-direction Gaussian filter: 11-tap shifted-add (exact) ----
    filt = float(WIN[0]) * t[:, 0:Hout, :]
    for k in range(1, WIN_SIZE):
        filt = filt + float(WIN[k]) * t[:, k:k + Hout, :]                   # (5*B, Hout, Wout)

    mu1 = filt[0 * B:1 * B]
    mu2 = filt[1 * B:2 * B]
    e_x2 = filt[2 * B:3 * B]
    e_y2 = filt[3 * B:4 * B]
    e_xy = filt[4 * B:5 * B]

    mu1_sq = mu1 * mu1
    mu2_sq = mu2 * mu2
    mu1_mu2 = mu1 * mu2
    sigma1_sq = e_x2 - mu1_sq
    sigma2_sq = e_y2 - mu2_sq
    sigma12 = e_xy - mu1_mu2

    # Single divide instead of two (factored SSIM map).
    num = (2.0 * mu1_mu2 + C1) * (2.0 * sigma12 + C2)
    den = (mu1_sq + mu2_sq + C1) * (sigma1_sq + sigma2_sq + C2)
    ssim_ref[...] = jnp.sum(num / den).reshape(1, 1, 1)


def ssim_loss(x, y, weight=1.0, matmul_dtype=jnp.float32):
    """Equivalent of SSIM_loss.forward(x, y). x, y: (N, C, H, W) float32, C=3.
    Jit-safe. Set matmul_dtype=jnp.bfloat16 for a faster MXU path on v6e/v7x."""
    N, C, H, W = x.shape
    assert H >= WIN_SIZE and W >= WIN_SIZE
    P = N * C
    Hout, Wout = H - WIN_SIZE + 1, W - WIN_SIZE + 1

    B = _choose_plane_block(P, H, W)
    G = P // B

    gw = jnp.asarray(_band_matrix(W, WIN)).astype(matmul_dtype)   # (W, Wout)
    xp = x.reshape(P, H, W).astype(jnp.float32)
    yp = y.reshape(P, H, W).astype(jnp.float32)

    part_shape = jax.ShapeDtypeStruct((G, 1, 1), jnp.float32)
    part_spec = pl.BlockSpec((1, 1, 1), lambda i: (i, 0, 0))

    sse_p, ssim_p, nanx_p, nany_p = pl.pallas_call(
        _ssim_loss_kernel,
        out_shape=(part_shape, part_shape, part_shape, part_shape),
        grid_spec=pltpu.PrefetchScalarGridSpec(
            num_scalar_prefetch=0,
            grid=(G,),
            in_specs=[
                pl.BlockSpec((B, H, W), lambda i: (i, 0, 0)),
                pl.BlockSpec((B, H, W), lambda i: (i, 0, 0)),
                pl.BlockSpec((W, Wout), lambda i: (0, 0)),   # constant block -> not re-fetched
            ],
            out_specs=(part_spec, part_spec, part_spec, part_spec),
        ),
        compiler_params=pltpu.CompilerParams(
            dimension_semantics=("parallel",),               # per-block partials -> no race
            vmem_limit_bytes=48 * 1024 * 1024,
        ),
    )(xp, yp, gw)

    # Tiny final reductions in plain JAX.
    sse = jnp.sum(sse_p)
    ssim_sum = jnp.sum(ssim_p)
    nan_x = jnp.sum(nanx_p)
    nan_y = jnp.sum(nany_p)

    # Jit-safe replacement for the torch NaN warning prints.
    jax.lax.cond(nan_x > 0,
                 lambda: jax.debug.print("Warning: NaN in input x"),
                 lambda: None)
    jax.lax.cond(nan_y > 0,
                 lambda: jax.debug.print("Warning: NaN in input y"),
                 lambda: None)

    mse = sse / (P * H * W)
    ssim_val = ssim_sum / (P * Hout * Wout)
    # torch: mse + weight * max(0, 1 - ssim)
    return mse + weight * jnp.maximum(0.0, 1.0 - ssim_val)


# ---------------- pure-JAX reference (for correctness check) ----------------
def _ref_gfilt(img, win):  # img: (P, H, W), valid separable filter
    s = win.shape[0]
    H, W = img.shape[-2:]
    tmp = sum(win[k] * img[:, :, k:k + W - s + 1] for k in range(s))
    out = sum(win[k] * tmp[:, k:k + H - s + 1, :] for k in range(s))
    return out


def _ref_ssim_loss(x, y, weight=1.0):
    N, C, H, W = x.shape
    win = jnp.asarray(WIN)
    mse = jnp.mean((x - y) ** 2)
    dx = jnp.clip((x + 1.0) / 2.0, 0.0, 1.0).reshape(N * C, H, W)
    dy = jnp.clip((y + 1.0) / 2.0, 0.0, 1.0).reshape(N * C, H, W)
    mu1, mu2 = _ref_gfilt(dx, win), _ref_gfilt(dy, win)
    s1 = _ref_gfilt(dx * dx, win) - mu1 * mu1
    s2 = _ref_gfilt(dy * dy, win) - mu2 * mu2
    s12 = _ref_gfilt(dx * dy, win) - mu1 * mu2
    cs = (2 * s12 + C2) / (s1 + s2 + C2)
    smap = ((2 * mu1 * mu2 + C1) / (mu1 * mu1 + mu2 * mu2 + C1)) * cs
    ssim_val = jnp.mean(smap)
    return mse + weight * jnp.maximum(0.0, 1.0 - ssim_val)


if __name__ == "__main__":
    key = jax.random.PRNGKey(0)
    k1, k2 = jax.random.split(key)
    # SSIM module is constructed with channel=3 -> inputs must have C=3.
    x = jax.random.normal(k1, (2, 3, 16, 16), dtype=jnp.float32)
    y = jax.random.normal(k2, (2, 3, 16, 16), dtype=jnp.float32)

    loss_fn = jax.jit(lambda a, b: ssim_loss(a, b, weight=1.0))
    loss = jax.block_until_ready(loss_fn(x, y))
    ref = jax.block_until_ready(_ref_ssim_loss(x, y, weight=1.0))
    np.testing.assert_allclose(np.asarray(loss), np.asarray(ref),
                               rtol=1e-4, atol=1e-4)
    print("KERNEL_OK")
</pallas_src>

<mosaic_0001>
module attributes {stable_mosaic.version = 11 : i64} {
  func.func @_ssim_loss_kernel(%arg0: i32, %arg1: memref<3x16x16xf32, #tpu.memory_space<vmem>>, %arg2: memref<3x16x16xf32, #tpu.memory_space<vmem>>, %arg3: memref<16x6xf32, #tpu.memory_space<vmem>>, %arg4: memref<1x1x1xf32, #tpu.memory_space<vmem>>, %arg5: memref<1x1x1xf32, #tpu.memory_space<vmem>>, %arg6: memref<1x1x1xf32, #tpu.memory_space<vmem>>, %arg7: memref<1x1x1xf32, #tpu.memory_space<vmem>>) attributes {dimension_semantics = [#tpu.dimension_semantics<parallel>], iteration_bounds = array<i64: 2>, scalar_prefetch = 0 : i64, scratch_operands = 0 : i64, tpu.core_type = #tpu.core_type<tc>, window_params = [{transform_indices = @transform_0, window_bounds = array<i64: 3, 16, 16>}, {transform_indices = @transform_1, window_bounds = array<i64: 3, 16, 16>}, {pipeline_mode = #tpu.pipeline_mode<synchronous>, transform_indices = @transform_2, window_bounds = array<i64: 16, 6>}, {transform_indices = @transform_3, window_bounds = array<i64: 1, 1, 1>}, {transform_indices = @transform_4, window_bounds = array<i64: 1, 1, 1>}, {transform_indices = @transform_5, window_bounds = array<i64: 1, 1, 1>}, {transform_indices = @transform_6, window_bounds = array<i64: 1, 1, 1>}]} {
    %c0 = arith.constant 0 : index
    %c0_0 = arith.constant 0 : index
    %c0_1 = arith.constant 0 : index
    %0 = vector.load %arg1[%c0, %c0_0, %c0_1] : memref<3x16x16xf32, #tpu.memory_space<vmem>>, vector<3x16x16xf32>
    %c0_2 = arith.constant 0 : index
    %c0_3 = arith.constant 0 : index
    %c0_4 = arith.constant 0 : index
    %1 = vector.load %arg2[%c0_2, %c0_3, %c0_4] : memref<3x16x16xf32, #tpu.memory_space<vmem>>, vector<3x16x16xf32>
    %2 = arith.cmpf one, %0, %0 : vector<3x16x16xf32>
    %3 = arith.extui %2 : vector<3x16x16xi1> to vector<3x16x16xi32>
    %4 = arith.sitofp %3 : vector<3x16x16xi32> to vector<3x16x16xf32>
    %5 = vector.shape_cast %4 : vector<3x16x16xf32> to vector<1x3x16x16xf32>
    %cst = arith.constant dense<0.000000e+00> : vector<1xf32>
    %6 = vector.multi_reduction <add>, %5, %cst [1, 2, 3] : vector<1x3x16x16xf32> to vector<1xf32>
    %7 = vector.shape_cast %6 : vector<1xf32> to vector<1x1x1x1xf32>
    %8 = vector.extract %7[0, 0, 0, 0] : f32 from vector<1x1x1x1xf32>
    %9 = vector.broadcast %8 : f32 to vector<1x1x1xf32>
    %c0_5 = arith.constant 0 : index
    %c0_6 = arith.constant 0 : index
    %c0_7 = arith.constant 0 : index
    %10 = vector.load %arg6[%c0_5, %c0_6, %c0_7] : memref<1x1x1xf32, #tpu.memory_space<vmem>>, vector<1x1x1xf32>
    tpu.vector_store %arg6[%c0_5, %c0_6, %c0_7], %9 {strides = array<i32>} : memref<1x1x1xf32, #tpu.memory_space<vmem>>, vector<1x1x1xf32>,
    %11 = arith.cmpf one, %1, %1 : vector<3x16x16xf32>
    %12 = arith.extui %11 : vector<3x16x16xi1> to vector<3x16x16xi32>
    %13 = arith.sitofp %12 : vector<3x16x16xi32> to vector<3x16x16xf32>
    %14 = vector.shape_cast %13 : vector<3x16x16xf32> to vector<1x3x16x16xf32>
    %cst_8 = arith.constant dense<0.000000e+00> : vector<1xf32>
    %15 = vector.multi_reduction <add>, %14, %cst_8 [1, 2, 3] : vector<1x3x16x16xf32> to vector<1xf32>
    %16 = vector.shape_cast %15 : vector<1xf32> to vector<1x1x1x1xf32>
    %17 = vector.extract %16[0, 0, 0, 0] : f32 from vector<1x1x1x1xf32>
    %18 = vector.broadcast %17 : f32 to vector<1x1x1xf32>
    %c0_9 = arith.constant 0 : index
    %c0_10 = arith.constant 0 : index
    %c0_11 = arith.constant 0 : index
    %19 = vector.load %arg7[%c0_9, %c0_10, %c0_11] : memref<1x1x1xf32, #tpu.memory_space<vmem>>, vector<1x1x1xf32>
    tpu.vector_store %arg7[%c0_9, %c0_10, %c0_11], %18 {strides = array<i32>} : memref<1x1x1xf32, #tpu.memory_space<vmem>>, vector<1x1x1xf32>,
    %20 = arith.subf %0, %1 : vector<3x16x16xf32>
    %21 = arith.mulf %20, %20 : vector<3x16x16xf32>
    %22 = vector.shape_cast %21 : vector<3x16x16xf32> to vector<1x3x16x16xf32>
    %cst_12 = arith.constant dense<0.000000e+00> : vector<1xf32>
    %23 = vector.multi_reduction <add>, %22, %cst_12 [1, 2, 3] : vector<1x3x16x16xf32> to vector<1xf32>
    %24 = vector.shape_cast %23 : vector<1xf32> to vector<1x1x1x1xf32>
    %25 = vector.extract %24[0, 0, 0, 0] : f32 from vector<1x1x1x1xf32>
    %26 = vector.broadcast %25 : f32 to vector<1x1x1xf32>
    %c0_13 = arith.constant 0 : index
    %c0_14 = arith.constant 0 : index
    %c0_15 = arith.constant 0 : index
    %27 = vector.load %arg4[%c0_13, %c0_14, %c0_15] : memref<1x1x1xf32, #tpu.memory_space<vmem>>, vector<1x1x1xf32>
    tpu.vector_store %arg4[%c0_13, %c0_14, %c0_15], %26 {strides = array<i32>} : memref<1x1x1xf32, #tpu.memory_space<vmem>>, vector<1x1x1xf32>,
    %cst_16 = arith.constant 1.000000e+00 : f32
    %28 = vector.broadcast %cst_16 : f32 to vector<3x16x16xf32>
    %29 = arith.addf %0, %28 : vector<3x16x16xf32>
    %cst_17 = arith.constant 5.000000e-01 : f32
    %30 = vector.broadcast %cst_17 : f32 to vector<3x16x16xf32>
    %31 = arith.mulf %29, %30 : vector<3x16x16xf32>
    %cst_18 = arith.constant 0.000000e+00 : f32
    %cst_19 = arith.constant 1.000000e+00 : f32
    %32 = vector.broadcast %cst_18 : f32 to vector<3x16x16xf32>
    %33 = arith.maximumf %32, %31 : vector<3x16x16xf32>
    %34 = vector.broadcast %cst_19 : f32 to vector<3x16x16xf32>
    %35 = arith.minimumf %34, %33 : vector<3x16x16xf32>
    %36 = vector.shape_cast %35 : vector<3x16x16xf32> to vector<48x16xf32>
    %cst_20 = arith.constant 1.000000e+00 : f32
    %37 = vector.broadcast %cst_20 : f32 to vector<3x16x16xf32>
    %38 = arith.addf %1, %37 : vector<3x16x16xf32>
    %cst_21 = arith.constant 5.000000e-01 : f32
    %39 = vector.broadcast %cst_21 : f32 to vector<3x16x16xf32>
    %40 = arith.mulf %38, %39 : vector<3x16x16xf32>
    %cst_22 = arith.constant 0.000000e+00 : f32
    %cst_23 = arith.constant 1.000000e+00 : f32
    %41 = vector.broadcast %cst_22 : f32 to vector<3x16x16xf32>
    %42 = arith.maximumf %41, %40 : vector<3x16x16xf32>
    %43 = vector.broadcast %cst_23 : f32 to vector<3x16x16xf32>
    %44 = arith.minimumf %43, %42 : vector<3x16x16xf32>
    %45 = vector.shape_cast %44 : vector<3x16x16xf32> to vector<48x16xf32>
    %46 = arith.mulf %36, %36 : vector<48x16xf32>
    %47 = arith.mulf %45, %45 : vector<48x16xf32>
    %48 = arith.mulf %36, %45 : vector<48x16xf32>
    %49 = tpu.concatenate %36, %45, %46, %47, %48 in 0 : vector<48x16xf32>, vector<48x16xf32>, vector<48x16xf32>, vector<48x16xf32>, vector<48x16xf32> -> vector<240x16xf32>
    %c0_24 = arith.constant 0 : index
    %c0_25 = arith.constant 0 : index
    %50 = vector.load %arg3[%c0_24, %c0_25] : memref<16x6xf32, #tpu.memory_space<vmem>>, vector<16x6xf32>
    %cst_26 = arith.constant dense<0.000000e+00> : vector<240x6xf32>
    %51 = tpu.matmul %49, %50, %cst_26 {dimension_numbers = #tpu.dot_dimension_numbers<[1], [0], [0], [1], [0, 0, 1, 1], [], []>} : vector<240x16xf32>, vector<16x6xf32>, vector<240x6xf32> -> vector<240x6xf32>
    %52 = vector.shape_cast %51 : vector<240x6xf32> to vector<15x16x6xf32>
    %53 = vector.extract_strided_slice %52 {offsets = [0, 0, 0], sizes = [15, 6, 6], strides = [1, 1, 1]} : vector<15x16x6xf32> to vector<15x6x6xf32>
    %cst_27 = arith.constant 0.00102838036 : f32
    %54 = vector.broadcast %cst_27 : f32 to vector<15x6x6xf32>
    %55 = arith.mulf %54, %53 : vector<15x6x6xf32>
    %56 = vector.extract_strided_slice %52 {offsets = [0, 1, 0], sizes = [15, 6, 6], strides = [1, 1, 1]} : vector<15x16x6xf32> to vector<15x6x6xf32>
    %cst_28 = arith.constant 0.00759875868 : f32
    %57 = vector.broadcast %cst_28 : f32 to vector<15x6x6xf32>
    %58 = arith.mulf %57, %56 : vector<15x6x6xf32>
    %59 = arith.addf %55, %58 : vector<15x6x6xf32>
    %60 = vector.extract_strided_slice %52 {offsets = [0, 2, 0], sizes = [15, 6, 6], strides = [1, 1, 1]} : vector<15x16x6xf32> to vector<15x6x6xf32>
    %cst_29 = arith.constant 0.0360007733 : f32
    %61 = vector.broadcast %cst_29 : f32 to vector<15x6x6xf32>
    %62 = arith.mulf %61, %60 : vector<15x6x6xf32>
    %63 = arith.addf %59, %62 : vector<15x6x6xf32>
    %64 = vector.extract_strided_slice %52 {offsets = [0, 3, 0], sizes = [15, 6, 6], strides = [1, 1, 1]} : vector<15x16x6xf32> to vector<15x6x6xf32>
    %cst_30 = arith.constant 0.109360702 : f32
    %65 = vector.broadcast %cst_30 : f32 to vector<15x6x6xf32>
    %66 = arith.mulf %65, %64 : vector<15x6x6xf32>
    %67 = arith.addf %63, %66 : vector<15x6x6xf32>
    %68 = vector.extract_strided_slice %52 {offsets = [0, 4, 0], sizes = [15, 6, 6], strides = [1, 1, 1]} : vector<15x16x6xf32> to vector<15x6x6xf32>
    %cst_31 = arith.constant 0.213005543 : f32
    %69 = vector.broadcast %cst_31 : f32 to vector<15x6x6xf32>
    %70 = arith.mulf %69, %68 : vector<15x6x6xf32>
    %71 = arith.addf %67, %70 : vector<15x6x6xf32>
    %72 = vector.extract_strided_slice %52 {offsets = [0, 5, 0], sizes = [15, 6, 6], strides = [1, 1, 1]} : vector<15x16x6xf32> to vector<15x6x6xf32>
    %cst_32 = arith.constant 0.266011745 : f32
    %73 = vector.broadcast %cst_32 : f32 to vector<15x6x6xf32>
    %74 = arith.mulf %73, %72 : vector<15x6x6xf32>
    %75 = arith.addf %71, %74 : vector<15x6x6xf32>
    %76 = vector.extract_strided_slice %52 {offsets = [0, 6, 0], sizes = [15, 6, 6], strides = [1, 1, 1]} : vector<15x16x6xf32> to vector<15x6x6xf32>
    %cst_33 = arith.constant 0.213005543 : f32
    %77 = vector.broadcast %cst_33 : f32 to vector<15x6x6xf32>
    %78 = arith.mulf %77, %76 : vector<15x6x6xf32>
    %79 = arith.addf %75, %78 : vector<15x6x6xf32>
    %80 = vector.extract_strided_slice %52 {offsets = [0, 7, 0], sizes = [15, 6, 6], strides = [1, 1, 1]} : vector<15x16x6xf32> to vector<15x6x6xf32>
    %cst_34 = arith.constant 0.109360702 : f32
    %81 = vector.broadcast %cst_34 : f32 to vector<15x6x6xf32>
    %82 = arith.mulf %81, %80 : vector<15x6x6xf32>
    %83 = arith.addf %79, %82 : vector<15x6x6xf32>
    %84 = vector.extract_strided_slice %52 {offsets = [0, 8, 0], sizes = [15, 6, 6], strides = [1, 1, 1]} : vector<15x16x6xf32> to vector<15x6x6xf32>
    %cst_35 = arith.constant 0.0360007733 : f32
    %85 = vector.broadcast %cst_35 : f32 to vector<15x6x6xf32>
    %86 = arith.mulf %85, %84 : vector<15x6x6xf32>
    %87 = arith.addf %83, %86 : vector<15x6x6xf32>
    %88 = vector.extract_strided_slice %52 {offsets = [0, 9, 0], sizes = [15, 6, 6], strides = [1, 1, 1]} : vector<15x16x6xf32> to vector<15x6x6xf32>
    %cst_36 = arith.constant 0.00759875868 : f32
    %89 = vector.broadcast %cst_36 : f32 to vector<15x6x6xf32>
    %90 = arith.mulf %89, %88 : vector<15x6x6xf32>
    %91 = arith.addf %87, %90 : vector<15x6x6xf32>
    %92 = vector.extract_strided_slice %52 {offsets = [0, 10, 0], sizes = [15, 6, 6], strides = [1, 1, 1]} : vector<15x16x6xf32> to vector<15x6x6xf32>
    %cst_37 = arith.constant 0.00102838036 : f32
    %93 = vector.broadcast %cst_37 : f32 to vector<15x6x6xf32>
    %94 = arith.mulf %93, %92 : vector<15x6x6xf32>
    %95 = arith.addf %91, %94 : vector<15x6x6xf32>
    %96 = vector.extract_strided_slice %95 {offsets = [0, 0, 0], sizes = [3, 6, 6], strides = [1, 1, 1]} : vector<15x6x6xf32> to vector<3x6x6xf32>
    %97 = vector.extract_strided_slice %95 {offsets = [3, 0, 0], sizes = [3, 6, 6], strides = [1, 1, 1]} : vector<15x6x6xf32> to vector<3x6x6xf32>
    %98 = vector.extract_strided_slice %95 {offsets = [6, 0, 0], sizes = [3, 6, 6], strides = [1, 1, 1]} : vector<15x6x6xf32> to vector<3x6x6xf32>
    %99 = vector.extract_strided_slice %95 {offsets = [9, 0, 0], sizes = [3, 6, 6], strides = [1, 1, 1]} : vector<15x6x6xf32> to vector<3x6x6xf32>
    %100 = vector.extract_strided_slice %95 {offsets = [12, 0, 0], sizes = [3, 6, 6], strides = [1, 1, 1]} : vector<15x6x6xf32> to vector<3x6x6xf32>
    %101 = arith.mulf %96, %96 : vector<3x6x6xf32>
    %102 = arith.mulf %97, %97 : vector<3x6x6xf32>
    %103 = arith.mulf %96, %97 : vector<3x6x6xf32>
    %104 = arith.subf %98, %101 : vector<3x6x6xf32>
    %105 = arith.subf %99, %102 : vector<3x6x6xf32>
    %106 = arith.subf %100, %103 : vector<3x6x6xf32>
    %cst_38 = arith.constant 2.000000e+00 : f32
    %107 = vector.broadcast %cst_38 : f32 to vector<3x6x6xf32>
    %108 = arith.mulf %107, %103 : vector<3x6x6xf32>
    %cst_39 = arith.constant 9.99999974E-5 : f32
    %109 = vector.broadcast %cst_39 : f32 to vector<3x6x6xf32>
    %110 = arith.addf %108, %109 : vector<3x6x6xf32>
    %cst_40 = arith.constant 2.000000e+00 : f32
    %111 = vector.broadcast %cst_40 : f32 to vector<3x6x6xf32>
    %112 = arith.mulf %111, %106 : vector<3x6x6xf32>
    %cst_41 = arith.constant 8.99999984E-4 : f32
    %113 = vector.broadcast %cst_41 : f32 to vector<3x6x6xf32>
    %114 = arith.addf %112, %113 : vector<3x6x6xf32>
    %115 = arith.mulf %110, %114 : vector<3x6x6xf32>
    %116 = arith.addf %101, %102 : vector<3x6x6xf32>
    %cst_42 = arith.constant 9.99999974E-5 : f32
    %117 = vector.broadcast %cst_42 : f32 to vector<3x6x6xf32>
    %118 = arith.addf %116, %117 : vector<3x6x6xf32>
    %119 = arith.addf %104, %105 : vector<3x6x6xf32>
    %cst_43 = arith.constant 8.99999984E-4 : f32
    %120 = vector.broadcast %cst_43 : f32 to vector<3x6x6xf32>
    %121 = arith.addf %119, %120 : vector<3x6x6xf32>
    %122 = arith.mulf %118, %121 : vector<3x6x6xf32>
    %123 = arith.divf %115, %122 : vector<3x6x6xf32>
    %124 = vector.shape_cast %123 : vector<3x6x6xf32> to vector<1x3x6x6xf32>
    %cst_44 = arith.constant dense<0.000000e+00> : vector<1xf32>
    %125 = vector.multi_reduction <add>, %124, %cst_44 [1, 2, 3] : vector<1x3x6x6xf32> to vector<1xf32>
    %126 = vector.shape_cast %125 : vector<1xf32> to vector<1x1x1x1xf32>
    %127 = vector.extract %126[0, 0, 0, 0] : f32 from vector<1x1x1x1xf32>
    %128 = vector.broadcast %127 : f32 to vector<1x1x1xf32>
    %c0_45 = arith.constant 0 : index
    %c0_46 = arith.constant 0 : index
    %c0_47 = arith.constant 0 : index
    %129 = vector.load %arg5[%c0_45, %c0_46, %c0_47] : memref<1x1x1xf32, #tpu.memory_space<vmem>>, vector<1x1x1xf32>
    tpu.vector_store %arg5[%c0_45, %c0_46, %c0_47], %128 {strides = array<i32>} : memref<1x1x1xf32, #tpu.memory_space<vmem>>, vector<1x1x1xf32>,
    return
  }
  func.func @transform_0(%arg0: i32) -> (i32, i32, i32) {
    %c0_i32 = arith.constant 0 : i32
    %c0_i32_0 = arith.constant 0 : i32
    %c0_i32_1 = arith.constant 0 : i32
    return %arg0, %c0_i32, %c0_i32_0 : i32, i32, i32
  }
  func.func @transform_1(%arg0: i32) -> (i32, i32, i32) {
    %c0_i32 = arith.constant 0 : i32
    %c0_i32_0 = arith.constant 0 : i32
    %c0_i32_1 = arith.constant 0 : i32
    return %arg0, %c0_i32, %c0_i32_0 : i32, i32, i32
  }
  func.func @transform_2(%arg0: i32) -> (i32, i32) {
    %c0_i32 = arith.constant 0 : i32
    %c0_i32_0 = arith.constant 0 : i32
    %c0_i32_1 = arith.constant 0 : i32
    return %c0_i32, %c0_i32_0 : i32, i32
  }
  func.func @transform_3(%arg0: i32) -> (i32, i32, i32) {
    %c0_i32 = arith.constant 0 : i32
    %c0_i32_0 = arith.constant 0 : i32
    %c0_i32_1 = arith.constant 0 : i32
    return %arg0, %c0_i32, %c0_i32_0 : i32, i32, i32
  }
  func.func @transform_4(%arg0: i32) -> (i32, i32, i32) {
    %c0_i32 = arith.constant 0 : i32
    %c0_i32_0 = arith.constant 0 : i32
    %c0_i32_1 = arith.constant 0 : i32
    return %arg0, %c0_i32, %c0_i32_0 : i32, i32, i32
  }
  func.func @transform_5(%arg0: i32) -> (i32, i32, i32) {
    %c0_i32 = arith.constant 0 : i32
    %c0_i32_0 = arith.constant 0 : i32
    %c0_i32_1 = arith.constant 0 : i32
    return %arg0, %c0_i32, %c0_i32_0 : i32, i32, i32
  }
  func.func @transform_6(%arg0: i32) -> (i32, i32, i32) {
    %c0_i32 = arith.constant 0 : i32
    %c0_i32_0 = arith.constant 0 : i32
    %c0_i32_1 = arith.constant 0 : i32
    return %arg0, %c0_i32, %c0_i32_0 : i32, i32, i32
  }
}

</mosaic_0001>

<llo_original>
// kernel: _lambda_.1
$region0: #{_lambda_.1}
  #allocation0 [shape = 'u32[]', space=smem, size = 0x4, offset = 0x4, fixed_abs, tag = 'smem constant byte address 0x4 - core index']
  #allocation1 [shape = 'u32[144,128]{1,0:T(1,128)}', space=vmem, size = 0x12000, scoped, tag = 'internal scratch']
  %s0 = inlined_call_operand.hbm [shape: f32[6,16,16], index: 0, kind: input, shape index: {}]
  %s1 = inlined_call_operand.hbm [shape: f32[6,16,16], index: 1, kind: input, shape index: {}]
  %s2 = inlined_call_operand.vmem [shape: f32[16,6], index: 2, kind: input, shape index: {}]
  %s3 = inlined_call_operand.vmem [shape: f32[2,1,1], index: 3, kind: output, shape index: {0}]
  %s4 = inlined_call_operand.vmem [shape: f32[2,1,1], index: 4, kind: output, shape index: {1}]
  %s5 = inlined_call_operand.vmem [shape: f32[2,1,1], index: 5, kind: output, shape index: {2}]
  %s6 = inlined_call_operand.vmem [shape: f32[2,1,1], index: 6, kind: output, shape index: {3}]
  %7 = xla_tuple %s3, %s4, %s5, %s6
  %s8 = sld [smem:[#allocation0]]
  $region77: #{_lambda_.1} parent=0
    _
  %s10 = ssub.s32 1, %s8
  %s11 = scalar_select 0, %s10, %s8
  $region1: #{_lambda_.1} parent=0
    #allocation2 [shape = 'u8[49152]{0}', space=vmem, size = 0xc000, scoped, tag = 'input window, operand 0']
    #allocation3 [shape = 's32[2]{0}', space=sflag, size = 0x8, scoped, tag = 'scoped memory for _lambda_.1']
    #allocation4 [shape = 'u8[49152]{0}', space=vmem, size = 0xc000, scoped, tag = 'input window, operand 1']
    #allocation5 [shape = 's32[2]{0}', space=sflag, size = 0x8, scoped, tag = 'scoped memory for _lambda_.1']
    %12 = vsyncpa [#allocation3], 0
    %s13 = scalar_lea.sflag [#allocation3], 1
    %14 = vsyncpa %s13, 0
    %15 = vsyncpa [#allocation5], 0
    %s16 = scalar_lea.sflag [#allocation5], 1
    %17 = vsyncpa %s16, 0
    loop: start=0, step=1, limit=4
    $region2: #{_lambda_.1} parent=1 // loop_pre_header
      _
    $region3: #{_lambda_.1} parent=1 // loop_header
      %s19 = sphi 0, %s23
      %p20 = scmp.ge.s32.totalorder %s19, 4
      %s29 = sphi 0, %s31
      %s32 = sphi 0, %s29
      %s33 = sphi 0, %s32
      %s49 = sphi 0, %s33
      %s55 = sphi 0, %s57
      %s58 = sphi 0, %s55
      %s59 = sphi 0, %s58
      %s75 = sphi 0, %s59
      %s79 = sphi 0, %s79
      %s81 = sphi 0, %s79
      %s82 = sphi 0, %s81
      %s96 = sphi 0, %s82
      %s102 = sphi 0, %s104
      %s105 = sphi 0, %s102
      %s106 = sphi 0, %s105
      %s122 = sphi 0, %s106
      %s128 = sphi 0, %s130
      %s131 = sphi 0, %s128
      %s132 = sphi 0, %s131
      %s148 = sphi 0, %s132
      %s154 = sphi 0, %s156
      %s157 = sphi 0, %s154
      %s158 = sphi 0, %s157
      %s174 = sphi 0, %s158
      %s180 = sphi 0, %s182
      %s183 = sphi 0, %s180
      %s184 = sphi 0, %s183
      %s200 = sphi 0, %s184
    $region4: #{_lambda_.1} parent=1 // loop_header_branch
      %22 = sbr.rel (%p20) target = $region8
    $region5: #{_lambda_.1} parent=1 // loop_body
      %s24 = ssub.s32 %s19, 1
      %s25 = ssub.s32 %s19, 2
      %s26 = sadd.s32 %s19, 1
      %s27 = ssub.s32 %s19, %s26
      %p28 = scmp.eq.s32.totalorder %s27, 0
      %s30 = sadd.s32 %s29, 1
      %s31 = scalar_select %p28, %s29, %s30
      %p34 = pneg %p28
      %p35 = scmp.eq.s32.totalorder %s19, 1
      %p36 = por %p34, %p35
      %p37 = scmp.ne.s32.totalorder %s29, %s32
      %p38 = scmp.eq.s32.totalorder %s19, 0
      %p39 = por %p37, %p38
      %p40 = scmp.ne.s32.totalorder %s29, %s32
      %p41 = scmp.eq.s32.totalorder %s24, 1
      %p42 = por %p40, %p41
      %p43 = scmp.ne.s32.totalorder %s32, %s33
      %p44 = scmp.eq.s32.totalorder %s24, 0
      %p45 = por %p43, %p44
      %p46 = scmp.ne.s32.totalorder %s32, %s33
      %p47 = scmp.eq.s32.totalorder %s25, 1
      %p48 = por %p46, %p47
      %p50 = scmp.ne.s32.totalorder %s33, %s49
      %p51 = scmp.eq.s32.totalorder %s25, 0
      %p52 = por %p50, %p51
      %s53 = ssub.s32 %s19, %s26
      %p54 = scmp.eq.s32.totalorder %s53, 0
      %s56 = sadd.s32 %s55, 1
      %s57 = scalar_select %p54, %s55, %s56
      %p60 = pneg %p54
      %p61 = scmp.eq.s32.totalorder %s19, 1
      %p62 = por %p60, %p61
      %p63 = scmp.ne.s32.totalorder %s55, %s58
      %p64 = scmp.eq.s32.totalorder %s19, 0
      %p65 = por %p63, %p64
      %p66 = scmp.ne.s32.totalorder %s55, %s58
      %p67 = scmp.eq.s32.totalorder %s24, 1
      %p68 = por %p66, %p67
      %p69 = scmp.ne.s32.totalorder %s58, %s59
      %p70 = scmp.eq.s32.totalorder %s24, 0
      %p71 = por %p69, %p70
      %p72 = scmp.ne.s32.totalorder %s58, %s59
      %p73 = scmp.eq.s32.totalorder %s25, 1
      %p74 = por %p72, %p73
      %p76 = scmp.ne.s32.totalorder %s59, %s75
      %p77 = scmp.eq.s32.totalorder %s25, 0
      %p78 = por %p76, %p77
      %s80 = sadd.s32 %s79, 1
      %p83 = scmp.eq.s32.totalorder %s19, 1
      %p84 = scmp.ne.s32.totalorder %s79, %s81
      %p85 = scmp.eq.s32.totalorder %s19, 0
      %p86 = por %p84, %p85
      %p87 = scmp.ne.s32.totalorder %s79, %s81
      %p88 = scmp.eq.s32.totalorder %s24, 1
      %p89 = por %p87, %p88
      %p90 = scmp.ne.s32.totalorder %s81, %s82
      %p91 = scmp.eq.s32.totalorder %s24, 0
      %p92 = por %p90, %p91
      %p93 = scmp.ne.s32.totalorder %s81, %s82
      %p94 = scmp.eq.s32.totalorder %s25, 1
      %p95 = por %p93, %p94
      %p97 = scmp.ne.s32.totalorder %s82, %s96
      %p98 = scmp.eq.s32.totalorder %s25, 0
      %p99 = por %p97, %p98
      %s100 = ssub.s32 %s19, %s26
      %p101 = scmp.eq.s32.totalorder %s100, 0
      %s103 = sadd.s32 %s102, 1
      %s104 = scalar_select %p101, %s102, %s103
      %p107 = pneg %p101
      %p108 = scmp.eq.s32.totalorder %s19, 1
      %p109 = por %p107, %p108
      %p110 = scmp.ne.s32.totalorder %s102, %s105
      %p111 = scmp.eq.s32.totalorder %s19, 0
      %p112 = por %p110, %p111
      %p113 = scmp.ne.s32.totalorder %s102, %s105
      %p114 = scmp.eq.s32.totalorder %s24, 1
      %p115 = por %p113, %p114
      %p116 = scmp.ne.s32.totalorder %s105, %s106
      %p117 = scmp.eq.s32.totalorder %s24, 0
      %p118 = por %p116, %p117
      %p119 = scmp.ne.s32.totalorder %s105, %s106
      %p120 = scmp.eq.s32.totalorder %s25, 1
      %p121 = por %p119, %p120
      %p123 = scmp.ne.s32.totalorder %s106, %s122
      %p124 = scmp.eq.s32.totalorder %s25, 0
      %p125 = por %p123, %p124
      %s126 = ssub.s32 %s19, %s26
      %p127 = scmp.eq.s32.totalorder %s126, 0
      %s129 = sadd.s32 %s128, 1
      %s130 = scalar_select %p127, %s128, %s129
      %p133 = pneg %p127
      %p134 = scmp.eq.s32.totalorder %s19, 1
      %p135 = por %p133, %p134
      %p136 = scmp.ne.s32.totalorder %s128, %s131
      %p137 = scmp.eq.s32.totalorder %s19, 0
      %p138 = por %p136, %p137
      %p139 = scmp.ne.s32.totalorder %s128, %s131
      %p140 = scmp.eq.s32.totalorder %s24, 1
      %p141 = por %p139, %p140
      %p142 = scmp.ne.s32.totalorder %s131, %s132
      %p143 = scmp.eq.s32.totalorder %s24, 0
      %p144 = por %p142, %p143
      %p145 = scmp.ne.s32.totalorder %s131, %s132
      %p146 = scmp.eq.s32.totalorder %s25, 1
      %p147 = por %p145, %p146
      %p149 = scmp.ne.s32.totalorder %s132, %s148
      %p150 = scmp.eq.s32.totalorder %s25, 0
      %p151 = por %p149, %p150
      %s152 = ssub.s32 %s19, %s26
      %p153 = scmp.eq.s32.totalorder %s152, 0
      %s155 = sadd.s32 %s154, 1
      %s156 = scalar_select %p153, %s154, %s155
      %p159 = pneg %p153
      %p160 = scmp.eq.s32.totalorder %s19, 1
      %p161 = por %p159, %p160
      %p162 = scmp.ne.s32.totalorder %s154, %s157
      %p163 = scmp.eq.s32.totalorder %s19, 0
      %p164 = por %p162, %p163
      %p165 = scmp.ne.s32.totalorder %s154, %s157
      %p166 = scmp.eq.s32.totalorder %s24, 1
      %p167 = por %p165, %p166
      %p168 = scmp.ne.s32.totalorder %s157, %s158
      %p169 = scmp.eq.s32.totalorder %s24, 0
      %p170 = por %p168, %p169
      %p171 = scmp.ne.s32.totalorder %s157, %s158
      %p172 = scmp.eq.s32.totalorder %s25, 1
      %p173 = por %p171, %p172
      %p175 = scmp.ne.s32.totalorder %s158, %s174
      %p176 = scmp.eq.s32.totalorder %s25, 0
      %p177 = por %p175, %p176
      %s178 = ssub.s32 %s19, %s26
      %p179 = scmp.eq.s32.totalorder %s178, 0
      %s181 = sadd.s32 %s180, 1
      %s182 = scalar_select %p179, %s180, %s181
      %p185 = pneg %p179
      %p186 = scmp.eq.s32.totalorder %s19, 1
      %p187 = por %p185, %p186
      %p188 = scmp.ne.s32.totalorder %s180, %s183
      %p189 = scmp.eq.s32.totalorder %s19, 0
      %p190 = por %p188, %p189
      %p191 = scmp.ne.s32.totalorder %s180, %s183
      %p192 = scmp.eq.s32.totalorder %s24, 1
      %p193 = por %p191, %p192
      %p194 = scmp.ne.s32.totalorder %s183, %s184
      %p195 = scmp.eq.s32.totalorder %s24, 0
      %p196 = por %p194, %p195
      %p197 = scmp.ne.s32.totalorder %s183, %s184
      %p198 = scmp.eq.s32.totalorder %s25, 1
      %p199 = por %p197, %p198
      %p201 = scmp.ne.s32.totalorder %s184, %s200
      %p202 = scmp.eq.s32.totalorder %s25, 0
      %p203 = por %p201, %p202
      %p204 = scmp.le.s32.totalorder 1, %s19
      %p205 = scmp.lt.s32.totalorder %s19, 3
      %p206 = pnand %p204, %p205
      %p207 = pneg %p206
      // Predicated region
      $region9: #{_lambda_.1} parent=5 // pred_check
        _
      $region10: #{_lambda_.1} parent=5 // pred_check_branch
        %209 = sbr.rel (%p206) target = $region12
      $region11: #{_lambda_.1} parent=5 // pred_region
        %s210 = ssub.s32 %s19, 1
        // Predicated region
        $region13: #{_lambda_.1} parent=11 // pred_check
          %p211 = pneg %p92
        $region14: #{_lambda_.1} parent=11 // pred_check_branch
          %213 = sbr.rel (%p211) target = $region16
        $region15: #{_lambda_.1} parent=11 // pred_region
          _
        $region16: #{_lambda_.1} parent=11 // pred_fallthru
          _
      $region12: #{_lambda_.1} parent=5 // pred_fallthru
        _
      %p214 = scmp.lt.s32.totalorder %s19, 2
      // Predicated region
      $region17: #{_lambda_.1} parent=5 // pred_check
        %p215 = pneg %p214
      $region18: #{_lambda_.1} parent=5 // pred_check_branch
        %217 = sbr.rel (%p215) target = $region20
      $region19: #{_lambda_.1} parent=5 // pred_region
        // Predicated region
        $region21: #{_lambda_.1} parent=19 // pred_check
          %p218 = pneg %p39
        $region22: #{_lambda_.1} parent=19 // pred_check_branch
          %220 = sbr.rel (%p218) target = $region24
        $region23: #{_lambda_.1} parent=19 // pred_region
          %s221 = sand.u32 %s29, 1
          %s222 = scalar_lea.sflag [#allocation3], %s221
          %s223 = sand.u32 %s29, 1
          %s224 = smul.addr %s223, 48
          %s225 = scalar_lea.vmem [#allocation2], %s224
          %s226 = smul.u32 3, %s19
          %s228 = ssub.s32 768, 768
          %229 = vsyncadd %s222, %s228
          %s230 = smul.addr %s226, 2
          %s231 = smul.addr %s230, 128
          %s232 = scalar_lea.hbm %s0, %s231
          %s233 = sshll.u32 %s225, 4
          %s234 = int_to_ptr.vmem [resolvable:$true] %s233
          %239 = dma.hbm_to_vmem [thread:$0]  %s232, 768, %s234, %s222, 128, 128, 8
        $region24: #{_lambda_.1} parent=19 // pred_fallthru
          _
        // Predicated region
        $region25: #{_lambda_.1} parent=19 // pred_check
          %p240 = pneg %p65
        $region26: #{_lambda_.1} parent=19 // pred_check_branch
          %242 = sbr.rel (%p240) target = $region28
        $region27: #{_lambda_.1} parent=19 // pred_region
          %s243 = sand.u32 %s55, 1
          %s244 = scalar_lea.sflag [#allocation5], %s243
          %s245 = sand.u32 %s55, 1
          %s246 = smul.addr %s245, 48
          %s247 = scalar_lea.vmem [#allocation4], %s246
          %s248 = smul.u32 3, %s19
          %s250 = ssub.s32 768, 768
          %251 = vsyncadd %s244, %s250
          %s252 = smul.addr %s248, 2
          %s253 = smul.addr %s252, 128
          %s254 = scalar_lea.hbm %s1, %s253
          %s255 = sshll.u32 %s247, 4
          %s256 = int_to_ptr.vmem [resolvable:$true] %s255
          %261 = dma.hbm_to_vmem [thread:$0]  %s254, 768, %s256, %s244, 128, 128, 8
        $region28: #{_lambda_.1} parent=19 // pred_fallthru
          _
      $region20: #{_lambda_.1} parent=5 // pred_fallthru
        _
      %p262 = scmp.le.s32.totalorder 1, %s19
      %p263 = scmp.lt.s32.totalorder %s19, 3
      %p264 = pnand %p262, %p263
      %p265 = pneg %p264
      // Predicated region
      $region29: #{_lambda_.1} parent=5 // pred_check
        _
      $region30: #{_lambda_.1} parent=5 // pred_check_branch
        %267 = sbr.rel (%p264) target = $region32
      $region31: #{_lambda_.1} parent=5 // pred_region
        %s268 = ssub.s32 %s19, 1
        %s269 = sand.u32 %s32, 1
        %s270 = scalar_lea.sflag [#allocation3], %s269
        %s271 = sand.u32 %s32, 1
        %s272 = smul.addr %s271, 48
        %s273 = scalar_lea.vmem [#allocation2], %s272
        // Predicated region
        $region33: #{_lambda_.1} parent=31 // pred_check
          %p274 = pneg %p45
        $region34: #{_lambda_.1} parent=31 // pred_check_branch
          %276 = sbr.rel (%p274) target = $region36
        $region35: #{_lambda_.1} parent=31 // pred_region
          %277 = dma.done %s270, 768
        $region36: #{_lambda_.1} parent=31 // pred_fallthru
          _
        %s278 = sand.u32 %s58, 1
        %s279 = scalar_lea.sflag [#allocation5], %s278
        %s280 = sand.u32 %s58, 1
        %s281 = smul.addr %s280, 48
        %s282 = scalar_lea.vmem [#allocation4], %s281
        // Predicated region
        $region37: #{_lambda_.1} parent=31 // pred_check
          %p283 = pneg %p71
        $region38: #{_lambda_.1} parent=31 // pred_check_branch
          %285 = sbr.rel (%p283) target = $region40
        $region39: #{_lambda_.1} parent=31 // pred_region
          %286 = dma.done %s279, 768
        $region40: #{_lambda_.1} parent=31 // pred_fallthru
          _
        %s287 = sand.u32 %s32, 1
        %s288 = scalar_lea.sflag [#allocation3], %s287
        %s289 = sand.u32 %s32, 1
        %s290 = smul.addr %s289, 48
        %s291 = scalar_lea.vmem [#allocation2], %s290
        %p292 = pneg %p45
        %p293 = pneg %p42
        %s294 = sand.u32 %s58, 1
        %s295 = scalar_lea.sflag [#allocation5], %s294
        %s296 = sand.u32 %s58, 1
        %s297 = smul.addr %s296, 48
        %s298 = scalar_lea.vmem [#allocation4], %s297
        %p299 = pneg %p71
        %p300 = pneg %p68
        %p301 = pneg %p92
        %p302 = pneg %p89
        %p303 = pneg %p118
        %p304 = pneg %p115
        %p305 = scmp.lt.s32.totalorder %s24, 1
        %s306 = scalar_select %p305, %s24, 1
        %s307 = scalar_lea.vmem %s3, %s306
        %p308 = pneg %p144
        %p309 = pneg %p141
        %p310 = scmp.lt.s32.totalorder %s24, 1
        %s311 = scalar_select %p310, %s24, 1
        %s312 = scalar_lea.vmem %s4, %s311
        %p313 = pneg %p170
        %p314 = pneg %p167
        %p315 = scmp.lt.s32.totalorder %s24, 1
        %s316 = scalar_select %p315, %s24, 1
        %s317 = scalar_lea.vmem %s5, %s316
        %p318 = pneg %p196
        %p319 = pneg %p193
        %p320 = scmp.lt.s32.totalorder %s24, 1
        %s321 = scalar_select %p320, %s24, 1
        %s322 = scalar_lea.vmem %s6, %s321
        %s323 = smul.u32 3, %s24
        %s324 = smul.u32 3, %s24
        %p325 = scmp.lt.s32.totalorder %s24, 1
        %s326 = scalar_select %p325, %s24, 1
        %s327 = scalar_lea.vmem %s3, %s326
        %p328 = scmp.lt.s32.totalorder %s24, 1
        %s329 = scalar_select %p328, %s24, 1
        %s330 = scalar_lea.vmem %s4, %s329
        %p331 = scmp.lt.s32.totalorder %s24, 1
        %s332 = scalar_select %p331, %s24, 1
        %s333 = scalar_lea.vmem %s5, %s332
        %p334 = scmp.lt.s32.totalorder %s24, 1
        %s335 = scalar_select %p334, %s24, 1
        %s336 = scalar_lea.vmem %s6, %s335
        %v337 = vld [vmem:[%s273] sm:$0xff]
        %v338 = vld [vmem:[%s273 + $0x8] sm:$0xff]
        %v339 = vld [vmem:[%s273 + $0x10] sm:$0xff]
        %v340 = vld [vmem:[%s273 + $0x18] sm:$0xff]
        %v341 = vld [vmem:[%s273 + $0x20] sm:$0xff]
        %v342 = vld [vmem:[%s273 + $0x28] sm:$0xff]
        %v343 = vld [vmem:[%s282] sm:$0xff]
        %v344 = vld [vmem:[%s282 + $0x8] sm:$0xff]
        %v345 = vld [vmem:[%s282 + $0x10] sm:$0xff]
        %v346 = vld [vmem:[%s282 + $0x18] sm:$0xff]
        %v347 = vld [vmem:[%s282 + $0x20] sm:$0xff]
        %v348 = vld [vmem:[%s282 + $0x28] sm:$0xff]
        %vm349 = vcmp.ne.f32.partialorder %v337, %v337
        %vm350 = vcmp.ne.f32.partialorder %v338, %v338
        %vm351 = vcmp.ne.f32.partialorder %v339, %v339
        %vm352 = vcmp.ne.f32.partialorder %v340, %v340
        %vm353 = vcmp.ne.f32.partialorder %v341, %v341
        %vm354 = vcmp.ne.f32.partialorder %v342, %v342
        %v355 = vsel %vm349, 1, 0
        %v356 = vsel %vm350, 1, 0
        %v357 = vsel %vm351, 1, 0
        %v358 = vsel %vm352, 1, 0
        %v359 = vsel %vm353, 1, 0
        %v360 = vsel %vm354, 1, 0
        %v361 = vcvt.s32.f32 %v355
        %v362 = vcvt.s32.f32 %v356
        %v363 = vcvt.s32.f32 %v357
        %v364 = vcvt.s32.f32 %v358
        %v365 = vcvt.s32.f32 %v359
        %v366 = vcvt.s32.f32 %v360
        %vm367 = vcmask 130048
        %v368 = vsel %vm367, %v361, 0.0
        %v369 = vsel %vm367, %v362, 0.0
        %v370 = vadd.f32 %v368, %v369
        %v371 = vsel %vm367, %v363, 0.0
        %v372 = vadd.f32 %v370, %v371
        %v373 = vsel %vm367, %v364, 0.0
        %v374 = vadd.f32 %v372, %v373
        %v375 = vsel %vm367, %v365, 0.0
        %v376 = vadd.f32 %v374, %v375
        %v377 = vsel %vm367, %v366, 0.0
        %v378 = vadd.f32 %v376, %v377
        %379 = vadd.xlane.f32.xlu0 %v378
        %v380 = vpop.xlane.xlu0 %379
        %v381 = vrot.slane %v380, 4
        %v382 = vadd.f32 %v380, %v381
        %v383 = vrot.slane %v382, 2
        %v384 = vadd.f32 %v382, %v383
        %v385 = vrot.slane %v384, 1
        %v386 = vadd.f32 %v384, %v385
        %s387 = vtos %v386
        %v388 = vstv %s387
        %vm389 = vcmask 0
        %390 = vst.msk [vmem:[%s333] sm:$0x1] %vm389, %v388
        %vm391 = vcmp.ne.f32.partialorder %v343, %v343
        %vm392 = vcmp.ne.f32.partialorder %v344, %v344
        %vm393 = vcmp.ne.f32.partialorder %v345, %v345
        %vm394 = vcmp.ne.f32.partialorder %v346, %v346
        %vm395 = vcmp.ne.f32.partialorder %v347, %v347
        %vm396 = vcmp.ne.f32.partialorder %v348, %v348
        %v397 = vsel %vm391, 1, 0
        %v398 = vsel %vm392, 1, 0
        %v399 = vsel %vm393, 1, 0
        %v400 = vsel %vm394, 1, 0
        %v401 = vsel %vm395, 1, 0
        %v402 = vsel %vm396, 1, 0
        %v403 = vcvt.s32.f32 %v397
        %v404 = vcvt.s32.f32 %v398
        %v405 = vcvt.s32.f32 %v399
        %v406 = vcvt.s32.f32 %v400
        %v407 = vcvt.s32.f32 %v401
        %v408 = vcvt.s32.f32 %v402
        %v409 = vsel %vm367, %v403, 0.0
        %v410 = vsel %vm367, %v404, 0.0
        %v411 = vadd.f32 %v409, %v410
        %v412 = vsel %vm367, %v405, 0.0
        %v413 = vadd.f32 %v411, %v412
        %v414 = vsel %vm367, %v406, 0.0
        %v415 = vadd.f32 %v413, %v414
        %v416 = vsel %vm367, %v407, 0.0
        %v417 = vadd.f32 %v415, %v416
        %v418 = vsel %vm367, %v408, 0.0
        %v419 = vadd.f32 %v417, %v418
        %420 = vadd.xlane.f32.xlu0 %v419
        %v421 = vpop.xlane.xlu0 %420
        %v422 = vrot.slane %v421, 4
        %v423 = vadd.f32 %v421, %v422
        %v424 = vrot.slane %v423, 2
        %v425 = vadd.f32 %v423, %v424
        %v426 = vrot.slane %v425, 1
        %v427 = vadd.f32 %v425, %v426
        %s428 = vtos %v427
        %v429 = vstv %s428
        %430 = vst.msk [vmem:[%s336] sm:$0x1] %vm389, %v429
        %v431 = vsub.f32 %v337, %v343
        %v432 = vsub.f32 %v338, %v344
        %v433 = vsub.f32 %v339, %v345
        %v434 = vsub.f32 %v340, %v346
        %v435 = vsub.f32 %v341, %v347
        %v436 = vsub.f32 %v342, %v348
        %v437 = vmul.f32 %v431, %v431
        %v438 = vmul.f32 %v432, %v432
        %v439 = vmul.f32 %v433, %v433
        %v440 = vmul.f32 %v434, %v434
        %v441 = vmul.f32 %v435, %v435
        %v442 = vmul.f32 %v436, %v436
        %v443 = vsel %vm367, %v437, 0.0
        %v444 = vsel %vm367, %v438, 0.0
        %v445 = vadd.f32 %v443, %v444
        %v446 = vsel %vm367, %v439, 0.0
        %v447 = vadd.f32 %v445, %v446
        %v448 = vsel %vm367, %v440, 0.0
        %v449 = vadd.f32 %v447, %v448
        %v450 = vsel %vm367, %v441, 0.0
        %v451 = vadd.f32 %v449, %v450
        %v452 = vsel %vm367, %v442, 0.0
        %v453 = vadd.f32 %v451, %v452
        %454 = vadd.xlane.f32.xlu0 %v453
        %v455 = vpop.xlane.xlu0 %454
        %v456 = vrot.slane %v455, 4
        %v457 = vadd.f32 %v455, %v456
        %v458 = vrot.slane %v457, 2
        %v459 = vadd.f32 %v457, %v458
        %v460 = vrot.slane %v459, 1
        %v461 = vadd.f32 %v459, %v460
        %s462 = vtos %v461
        %v463 = vstv %s462
        %464 = vst.msk [vmem:[%s327] sm:$0x1] %vm389, %v463
        %v465 = vadd.f32 %v337, 1.0
        %v466 = vadd.f32 %v338, 1.0
        %v467 = vadd.f32 %v339, 1.0
        %v468 = vadd.f32 %v340, 1.0
        %v469 = vadd.f32 %v341, 1.0
        %v470 = vadd.f32 %v342, 1.0
        %v471 = vmul.f32 %v465, 0.5
        %v472 = vmul.f32 %v466, 0.5
        %v473 = vmul.f32 %v467, 0.5
        %v474 = vmul.f32 %v468, 0.5
        %v475 = vmul.f32 %v469, 0.5
        %v476 = vmul.f32 %v470, 0.5
        %v477 = vmax.f32 %v471, 0.0
        %v478 = vmax.f32 %v472, 0.0
        %v479 = vmax.f32 %v473, 0.0
        %v480 = vmax.f32 %v474, 0.0
        %v481 = vmax.f32 %v475, 0.0
        %v482 = vmax.f32 %v476, 0.0
        %v483 = vmin.f32 %v477, 1.0
        %v484 = vmin.f32 %v478, 1.0
        %v485 = vmin.f32 %v479, 1.0
        %v486 = vmin.f32 %v480, 1.0
        %v487 = vmin.f32 %v481, 1.0
        %v488 = vmin.f32 %v482, 1.0
        %v489 = vadd.f32 %v343, 1.0
        %v490 = vadd.f32 %v344, 1.0
        %v491 = vadd.f32 %v345, 1.0
        %v492 = vadd.f32 %v346, 1.0
        %v493 = vadd.f32 %v347, 1.0
        %v494 = vadd.f32 %v348, 1.0
        %v495 = vmul.f32 %v489, 0.5
        %v496 = vmul.f32 %v490, 0.5
        %v497 = vmul.f32 %v491, 0.5
        %v498 = vmul.f32 %v492, 0.5
        %v499 = vmul.f32 %v493, 0.5
        %v500 = vmul.f32 %v494, 0.5
        %v501 = vmax.f32 %v495, 0.0
        %v502 = vmax.f32 %v496, 0.0
        %v503 = vmax.f32 %v497, 0.0
        %v504 = vmax.f32 %v498, 0.0
        %v505 = vmax.f32 %v499, 0.0
        %v506 = vmax.f32 %v500, 0.0
        %v507 = vmin.f32 %v501, 1.0
        %v508 = vmin.f32 %v502, 1.0
        %v509 = vmin.f32 %v503, 1.0
        %v510 = vmin.f32 %v504, 1.0
        %v511 = vmin.f32 %v505, 1.0
        %v512 = vmin.f32 %v506, 1.0
        %v513 = vmul.f32 %v483, %v483
        %v514 = vmul.f32 %v484, %v484
        %v515 = vmul.f32 %v485, %v485
        %v516 = vmul.f32 %v486, %v486
        %v517 = vmul.f32 %v487, %v487
        %v518 = vmul.f32 %v488, %v488
        %v519 = vmul.f32 %v507, %v507
        %v520 = vmul.f32 %v508, %v508
        %v521 = vmul.f32 %v509, %v509
        %v522 = vmul.f32 %v510, %v510
        %v523 = vmul.f32 %v511, %v511
        %v524 = vmul.f32 %v512, %v512
        %v525 = vmul.f32 %v483, %v507
        %v526 = vmul.f32 %v484, %v508
        %v527 = vmul.f32 %v485, %v509
        %v528 = vmul.f32 %v486, %v510
        %v529 = vmul.f32 %v487, %v511
        %v530 = vmul.f32 %v488, %v512
        %v531 = vld [vmem:[%s2] sm:$0xff]
        %v532 = vld [vmem:[%s2 + $0x8] sm:$0xff]
        %v534 = vsel %vm367, %v483, 0
        %v537 = vsel %vm367, %v484, 0
        %v540 = vsel %vm367, %v485, 0
        %v543 = vsel %vm367, %v486, 0
        %v546 = vsel %vm367, %v487, 0
        %v549 = vsel %vm367, %v488, 0
        %v552 = vsel %vm367, %v507, 0
        %v555 = vsel %vm367, %v508, 0
        %v558 = vsel %vm367, %v509, 0
        %v561 = vsel %vm367, %v510, 0
        %v564 = vsel %vm367, %v511, 0
        %v567 = vsel %vm367, %v512, 0
        %v570 = vsel %vm367, %v513, 0
        %v573 = vsel %vm367, %v514, 0
        %v576 = vsel %vm367, %v515, 0
        %v579 = vsel %vm367, %v516, 0
        %v582 = vsel %vm367, %v517, 0
        %v585 = vsel %vm367, %v518, 0
        %v588 = vsel %vm367, %v519, 0
        %v591 = vsel %vm367, %v520, 0
        %v594 = vsel %vm367, %v521, 0
        %v597 = vsel %vm367, %v522, 0
        %v600 = vsel %vm367, %v523, 0
        %v603 = vsel %vm367, %v524, 0
        %v606 = vsel %vm367, %v525, 0
        %v609 = vsel %vm367, %v526, 0
        %v612 = vsel %vm367, %v527, 0
        %v615 = vsel %vm367, %v528, 0
        %v618 = vsel %vm367, %v529, 0
        %v621 = vsel %vm367, %v530, 0
        %623 = vmatprep.subr.mxu0 0.0
        %624 = vmatpush1.msra.mxu0 %v531
        %625 = vmatprep.subr.mxu0 0.0
        %626 = vmatpush1.msra.mxu0 %v532
        %627 = vmatprep.subr.mxu0 0.0
        %628 = vmatpush1.msra.mxu0 0.0
        %629 = vmatprep.subr.mxu0 0.0
        %630 = vmatpush1.msra.mxu0 0.0
        %631 = vmatprep.subr.mxu0 0.0
        %632 = vmatpush1.msra.mxu0 0.0
        %633 = vmatprep.subr.mxu0 0.0
        %634 = vmatpush1.msra.mxu0 0.0
        %635 = vmatprep.subr.mxu0 0.0
        %636 = vmatpush1.msra.mxu0 0.0
        %637 = vmatprep.subr.mxu0 0.0
        %638 = vmatpush1.msra.mxu0 0.0
        %639 = vmatprep.subr.mxu0 0.0
        %640 = vmatpush1.msra.mxu0 0.0
        %641 = vmatprep.subr.mxu0 0.0
        %642 = vmatpush1.msra.mxu0 0.0
        %643 = vmatprep.subr.mxu0 0.0
        %644 = vmatpush1.msra.mxu0 0.0
        %645 = vmatprep.subr.mxu0 0.0
        %646 = vmatpush1.msra.mxu0 0.0
        %647 = vmatprep.subr.mxu0 0.0
        %648 = vmatpush1.msra.mxu0 0.0
        %649 = vmatprep.subr.mxu0 0.0
        %650 = vmatpush1.msra.mxu0 0.0
        %651 = vmatprep.subr.mxu0 0.0
        %652 = vmatpush1.msra.mxu0 0.0
        %653 = vmatprep.subr.mxu0 0.0
        %654 = vmatpush1.msra.mxu0 0.0
        %655 = vmatprep.subr.mxu0 0.0
        %656 = vmatpush1.msra.mxu0 0.0
        %657 = vmatprep.subr.mxu0 0.0
        %658 = vmatpush1.msra.mxu0 0.0
        %659 = vmatprep.subr.mxu0 0.0
        %660 = vmatpush1.msra.mxu0 0.0
        %661 = vmatprep.subr.mxu0 0.0
        %662 = vmatpush1.msra.mxu0 0.0
        %663 = vmatprep.subr.mxu0 0.0
        %664 = vmatpush1.msra.mxu0 0.0
        %665 = vmatprep.subr.mxu0 0.0
        %666 = vmatpush1.msra.mxu0 0.0
        %667 = vmatprep.subr.mxu0 0.0
        %668 = vmatpush1.msra.mxu0 0.0
        %669 = vmatprep.subr.mxu0 0.0
        %670 = vmatpush1.msra.mxu0 0.0
        %671 = vmatprep.subr.mxu0 0.0
        %672 = vmatpush1.msra.mxu0 0.0
        %673 = vmatprep.subr.mxu0 0.0
        %674 = vmatpush1.msra.mxu0 0.0
        %675 = vmatprep.subr.mxu0 0.0
        %676 = vmatpush1.msra.mxu0 0.0
        %677 = vmatprep.subr.mxu0 0.0
        %678 = vmatpush1.msra.mxu0 0.0
        %679 = vmatprep.subr.mxu0 0.0
        %680 = vmatpush1.msra.mxu0 0.0
        %681 = vmatprep.subr.mxu0 0.0
        %682 = vmatpush1.msra.mxu0 0.0
        %683 = vmatprep.subr.mxu0 0.0
        %684 = vmatpush1.msra.mxu0 0.0
        %685 = vmatprep.subr.mxu0 0.0
        %686 = vmatpush1.msra.mxu0 0.0
        %687 = vmatprep.mubr.f32.mxu0 0.0
        %688 = vmatmul.mubr.f32.gmra.mrb[0].mxu0 %v534
        %v689 = vpop.f32.mrb[0].mxu0
        %v690 = vadd.f32 0.0, %v689
        %v691 = vpop.f32.mrb[0].mxu0
        %692 = vmatprep.mubr.f32.mxu0 0.0
        %693 = vmatmul.mubr.f32.gmra.mrb[0].mxu0 %v537
        %v694 = vpop.f32.mrb[0].mxu0
        %v695 = vadd.f32 0.0, %v694
        %v696 = vpop.f32.mrb[0].mxu0
        %697 = vmatprep.mubr.f32.mxu0 0.0
        %698 = vmatmul.mubr.f32.gmra.mrb[0].mxu0 %v540
        %v699 = vpop.f32.mrb[0].mxu0
        %v700 = vadd.f32 0.0, %v699
        %v701 = vpop.f32.mrb[0].mxu0
        %702 = vmatprep.mubr.f32.mxu0 0.0
        %703 = vmatmul.mubr.f32.gmra.mrb[0].mxu0 %v543
        %v704 = vpop.f32.mrb[0].mxu0
        %v705 = vadd.f32 0.0, %v704
        %v706 = vpop.f32.mrb[0].mxu0
        %707 = vmatprep.mubr.f32.mxu0 0.0
        %708 = vmatmul.mubr.f32.gmra.mrb[0].mxu0 %v546
        %v709 = vpop.f32.mrb[0].mxu0
        %v710 = vadd.f32 0.0, %v709
        %v711 = vpop.f32.mrb[0].mxu0
        %712 = vmatprep.mubr.f32.mxu0 0.0
        %713 = vmatmul.mubr.f32.gmra.mrb[0].mxu0 %v549
        %v714 = vpop.f32.mrb[0].mxu0
        %v715 = vadd.f32 0.0, %v714
        %v716 = vpop.f32.mrb[0].mxu0
        %717 = vmatprep.mubr.f32.mxu0 0.0
        %718 = vmatmul.mubr.f32.gmra.mrb[0].mxu0 %v552
        %v719 = vpop.f32.mrb[0].mxu0
        %v720 = vadd.f32 0.0, %v719
        %v721 = vpop.f32.mrb[0].mxu0
        %722 = vmatprep.mubr.f32.mxu0 0.0
        %723 = vmatmul.mubr.f32.gmra.mrb[0].mxu0 %v555
        %v724 = vpop.f32.mrb[0].mxu0
        %v725 = vadd.f32 0.0, %v724
        %v726 = vpop.f32.mrb[0].mxu0
        %727 = vmatprep.mubr.f32.mxu0 0.0
        %728 = vmatmul.mubr.f32.gmra.mrb[0].mxu0 %v558
        %v729 = vpop.f32.mrb[0].mxu0
        %v730 = vadd.f32 0.0, %v729
        %v731 = vpop.f32.mrb[0].mxu0
        %732 = vmatprep.mubr.f32.mxu0 0.0
        %733 = vmatmul.mubr.f32.gmra.mrb[0].mxu0 %v561
        %v734 = vpop.f32.mrb[0].mxu0
        %v735 = vadd.f32 0.0, %v734
        %v736 = vpop.f32.mrb[0].mxu0
        %737 = vmatprep.mubr.f32.mxu0 0.0
        %738 = vmatmul.mubr.f32.gmra.mrb[0].mxu0 %v564
        %v739 = vpop.f32.mrb[0].mxu0
        %v740 = vadd.f32 0.0, %v739
        %v741 = vpop.f32.mrb[0].mxu0
        %742 = vmatprep.mubr.f32.mxu0 0.0
        %743 = vmatmul.mubr.f32.gmra.mrb[0].mxu0 %v567
        %v744 = vpop.f32.mrb[0].mxu0
        %v745 = vadd.f32 0.0, %v744
        %v746 = vpop.f32.mrb[0].mxu0
        %747 = vmatprep.mubr.f32.mxu0 0.0
        %748 = vmatmul.mubr.f32.gmra.mrb[0].mxu0 %v570
        %v749 = vpop.f32.mrb[0].mxu0
        %v750 = vadd.f32 0.0, %v749
        %v751 = vpop.f32.mrb[0].mxu0
        %752 = vmatprep.mubr.f32.mxu0 0.0
        %753 = vmatmul.mubr.f32.gmra.mrb[0].mxu0 %v573
        %v754 = vpop.f32.mrb[0].mxu0
        %v755 = vadd.f32 0.0, %v754
        %v756 = vpop.f32.mrb[0].mxu0
        %757 = vmatprep.mubr.f32.mxu0 0.0
        %758 = vmatmul.mubr.f32.gmra.mrb[0].mxu0 %v576
        %v759 = vpop.f32.mrb[0].mxu0
        %v760 = vadd.f32 0.0, %v759
        %v761 = vpop.f32.mrb[0].mxu0
        %762 = vmatprep.mubr.f32.mxu0 0.0
        %763 = vmatmul.mubr.f32.gmra.mrb[0].mxu0 %v579
        %v764 = vpop.f32.mrb[0].mxu0
        %v765 = vadd.f32 0.0, %v764
        %v766 = vpop.f32.mrb[0].mxu0
        %767 = vmatprep.mubr.f32.mxu0 0.0
        %768 = vmatmul.mubr.f32.gmra.mrb[0].mxu0 %v582
        %v769 = vpop.f32.mrb[0].mxu0
        %v770 = vadd.f32 0.0, %v769
        %v771 = vpop.f32.mrb[0].mxu0
        %772 = vmatprep.mubr.f32.mxu0 0.0
        %773 = vmatmul.mubr.f32.gmra.mrb[0].mxu0 %v585
        %v774 = vpop.f32.mrb[0].mxu0
        %v775 = vadd.f32 0.0, %v774
        %v776 = vpop.f32.mrb[0].mxu0
        %777 = vmatprep.mubr.f32.mxu0 0.0
        %778 = vmatmul.mubr.f32.gmra.mrb[0].mxu0 %v588
        %v779 = vpop.f32.mrb[0].mxu0
        %v780 = vadd.f32 0.0, %v779
        %v781 = vpop.f32.mrb[0].mxu0
        %782 = vmatprep.mubr.f32.mxu0 0.0
        %783 = vmatmul.mubr.f32.gmra.mrb[0].mxu0 %v591
        %v784 = vpop.f32.mrb[0].mxu0
        %v785 = vadd.f32 0.0, %v784
        %v786 = vpop.f32.mrb[0].mxu0
        %787 = vmatprep.mubr.f32.mxu0 0.0
        %788 = vmatmul.mubr.f32.gmra.mrb[0].mxu0 %v594
        %v789 = vpop.f32.mrb[0].mxu0
        %v790 = vadd.f32 0.0, %v789
        %v791 = vpop.f32.mrb[0].mxu0
        %792 = vmatprep.mubr.f32.mxu0 0.0
        %793 = vmatmul.mubr.f32.gmra.mrb[0].mxu0 %v597
        %v794 = vpop.f32.mrb[0].mxu0
        %v795 = vadd.f32 0.0, %v794
        %v796 = vpop.f32.mrb[0].mxu0
        %797 = vmatprep.mubr.f32.mxu0 0.0
        %798 = vmatmul.mubr.f32.gmra.mrb[0].mxu0 %v600
        %v799 = vpop.f32.mrb[0].mxu0
        %v800 = vadd.f32 0.0, %v799
        %v801 = vpop.f32.mrb[0].mxu0
        %802 = vmatprep.mubr.f32.mxu0 0.0
        %803 = vmatmul.mubr.f32.gmra.mrb[0].mxu0 %v603
        %v804 = vpop.f32.mrb[0].mxu0
        %v805 = vadd.f32 0.0, %v804
        %v806 = vpop.f32.mrb[0].mxu0
        %807 = vmatprep.mubr.f32.mxu0 0.0
        %808 = vmatmul.mubr.f32.gmra.mrb[0].mxu0 %v606
        %v809 = vpop.f32.mrb[0].mxu0
        %v810 = vadd.f32 0.0, %v809
        %v811 = vpop.f32.mrb[0].mxu0
        %812 = vmatprep.mubr.f32.mxu0 0.0
        %813 = vmatmul.mubr.f32.gmra.mrb[0].mxu0 %v609
        %v814 = vpop.f32.mrb[0].mxu0
        %v815 = vadd.f32 0.0, %v814
        %v816 = vpop.f32.mrb[0].mxu0
        %817 = vmatprep.mubr.f32.mxu0 0.0
        %818 = vmatmul.mubr.f32.gmra.mrb[0].mxu0 %v612
        %v819 = vpop.f32.mrb[0].mxu0
        %v820 = vadd.f32 0.0, %v819
        %v821 = vpop.f32.mrb[0].mxu0
        %822 = vmatprep.mubr.f32.mxu0 0.0
        %823 = vmatmul.mubr.f32.gmra.mrb[0].mxu0 %v615
        %v824 = vpop.f32.mrb[0].mxu0
        %v825 = vadd.f32 0.0, %v824
        %v826 = vpop.f32.mrb[0].mxu0
        %827 = vmatprep.mubr.f32.mxu0 0.0
        %828 = vmatmul.mubr.f32.gmra.mrb[0].mxu0 %v618
        %v829 = vpop.f32.mrb[0].mxu0
        %v830 = vadd.f32 0.0, %v829
        %v831 = vpop.f32.mrb[0].mxu0
        %832 = vmatprep.mubr.f32.mxu0 0.0
        %833 = vmatmul.mubr.f32.gmra.mrb[0].mxu0 %v621
        %v834 = vpop.f32.mrb[0].mxu0
        %v835 = vadd.f32 0.0, %v834
        %v836 = vpop.f32.mrb[0].mxu0
        %837 = vdwg.mxu0
        %v838 = vmul.f32 %v690, 0.0010283804
        %v839 = vmul.f32 %v700, 0.0010283804
        %v840 = vmul.f32 %v710, 0.0010283804
        %v841 = vmul.f32 %v720, 0.0010283804
        %v842 = vmul.f32 %v730, 0.0010283804
        %v843 = vmul.f32 %v740, 0.0010283804
        %v844 = vmul.f32 %v750, 0.0010283804
        %v845 = vmul.f32 %v760, 0.0010283804
        %v846 = vmul.f32 %v770, 0.0010283804
        %v847 = vmul.f32 %v780, 0.0010283804
        %v848 = vmul.f32 %v790, 0.0010283804
        %v849 = vmul.f32 %v800, 0.0010283804
        %v850 = vmul.f32 %v810, 0.0010283804
        %v851 = vmul.f32 %v820, 0.0010283804
        %v852 = vmul.f32 %v830, 0.0010283804
        %v853 = vmul.f32 %v690, 0.0075987587
        %v854 = vmul.f32 %v700, 0.0075987587
        %v855 = vmul.f32 %v710, 0.0075987587
        %v856 = vmul.f32 %v720, 0.0075987587
        %v857 = vmul.f32 %v730, 0.0075987587
        %v858 = vmul.f32 %v740, 0.0075987587
        %v859 = vmul.f32 %v750, 0.0075987587
        %v860 = vmul.f32 %v760, 0.0075987587
        %v861 = vmul.f32 %v770, 0.0075987587
        %v862 = vmul.f32 %v780, 0.0075987587
        %v863 = vmul.f32 %v790, 0.0075987587
        %v864 = vmul.f32 %v800, 0.0075987587
        %v865 = vmul.f32 %v810, 0.0075987587
        %v866 = vmul.f32 %v820, 0.0075987587
        %v867 = vmul.f32 %v830, 0.0075987587
        %v883 = vrot.slane %v853, 1
        %v884 = vrot.slane %v854, 1
        %v885 = vrot.slane %v855, 1
        %v886 = vrot.slane %v856, 1
        %v887 = vrot.slane %v857, 1
        %v888 = vrot.slane %v858, 1
        %v889 = vrot.slane %v859, 1
        %v890 = vrot.slane %v860, 1
        %v891 = vrot.slane %v861, 1
        %v892 = vrot.slane %v862, 1
        %v893 = vrot.slane %v863, 1
        %v894 = vrot.slane %v864, 1
        %v895 = vrot.slane %v865, 1
        %v896 = vrot.slane %v866, 1
        %v897 = vrot.slane %v867, 1
        %v913 = vadd.f32 %v838, %v883
        %v914 = vadd.f32 %v839, %v884
        %v915 = vadd.f32 %v840, %v885
        %v916 = vadd.f32 %v841, %v886
        %v917 = vadd.f32 %v842, %v887
        %v918 = vadd.f32 %v843, %v888
        %v919 = vadd.f32 %v844, %v889
        %v920 = vadd.f32 %v845, %v890
        %v921 = vadd.f32 %v846, %v891
        %v922 = vadd.f32 %v847, %v892
        %v923 = vadd.f32 %v848, %v893
        %v924 = vadd.f32 %v849, %v894
        %v925 = vadd.f32 %v850, %v895
        %v926 = vadd.f32 %v851, %v896
        %v927 = vadd.f32 %v852, %v897
        %v928 = vmul.f32 %v690, 0.036000773
        %v929 = vmul.f32 %v700, 0.036000773
        %v930 = vmul.f32 %v710, 0.036000773
        %v931 = vmul.f32 %v720, 0.036000773
        %v932 = vmul.f32 %v730, 0.036000773
        %v933 = vmul.f32 %v740, 0.036000773
        %v934 = vmul.f32 %v750, 0.036000773
        %v935 = vmul.f32 %v760, 0.036000773
        %v936 = vmul.f32 %v770, 0.036000773
        %v937 = vmul.f32 %v780, 0.036000773
        %v938 = vmul.f32 %v790, 0.036000773
        %v939 = vmul.f32 %v800, 0.036000773
        %v940 = vmul.f32 %v810, 0.036000773
        %v941 = vmul.f32 %v820, 0.036000773
        %v942 = vmul.f32 %v830, 0.036000773
        %v958 = vrot.slane %v928, 2
        %v959 = vrot.slane %v929, 2
        %v960 = vrot.slane %v930, 2
        %v961 = vrot.slane %v931, 2
        %v962 = vrot.slane %v932, 2
        %v963 = vrot.slane %v933, 2
        %v964 = vrot.slane %v934, 2
        %v965 = vrot.slane %v935, 2
        %v966 = vrot.slane %v936, 2
        %v967 = vrot.slane %v937, 2
        %v968 = vrot.slane %v938, 2
        %v969 = vrot.slane %v939, 2
        %v970 = vrot.slane %v940, 2
        %v971 = vrot.slane %v941, 2
        %v972 = vrot.slane %v942, 2
        %v988 = vadd.f32 %v913, %v958
        %v989 = vadd.f32 %v914, %v959
        %v990 = vadd.f32 %v915, %v960
        %v991 = vadd.f32 %v916, %v961
        %v992 = vadd.f32 %v917, %v962
        %v993 = vadd.f32 %v918, %v963
        %v994 = vadd.f32 %v919, %v964
        %v995 = vadd.f32 %v920, %v965
        %v996 = vadd.f32 %v921, %v966
        %v997 = vadd.f32 %v922, %v967
        %v998 = vadd.f32 %v923, %v968
        %v999 = vadd.f32 %v924, %v969
        %v1000 = vadd.f32 %v925, %v970
        %v1001 = vadd.f32 %v926, %v971
        %v1002 = vadd.f32 %v927, %v972
        %v1003 = vmul.f32 %v690, 0.1093607
        %v1004 = vmul.f32 %v695, 0.1093607
        %v1005 = vmul.f32 %v700, 0.1093607
        %v1006 = vmul.f32 %v705, 0.1093607
        %v1007 = vmul.f32 %v710, 0.1093607
        %v1008 = vmul.f32 %v715, 0.1093607
        %v1009 = vmul.f32 %v720, 0.1093607
        %v1010 = vmul.f32 %v725, 0.1093607
        %v1011 = vmul.f32 %v730, 0.1093607
        %v1012 = vmul.f32 %v735, 0.1093607
        %v1013 = vmul.f32 %v740, 0.1093607
        %v1014 = vmul.f32 %v745, 0.1093607
        %v1015 = vmul.f32 %v750, 0.1093607
        %v1016 = vmul.f32 %v755, 0.1093607
        %v1017 = vmul.f32 %v760, 0.1093607
        %v1018 = vmul.f32 %v765, 0.1093607
        %v1019 = vmul.f32 %v770, 0.1093607
        %v1020 = vmul.f32 %v775, 0.1093607
        %v1021 = vmul.f32 %v780, 0.1093607
        %v1022 = vmul.f32 %v785, 0.1093607
        %v1023 = vmul.f32 %v790, 0.1093607
        %v1024 = vmul.f32 %v795, 0.1093607
        %v1025 = vmul.f32 %v800, 0.1093607
        %v1026 = vmul.f32 %v805, 0.1093607
        %v1027 = vmul.f32 %v810, 0.1093607
        %v1028 = vmul.f32 %v815, 0.1093607
        %v1029 = vmul.f32 %v820, 0.1093607
        %v1030 = vmul.f32 %v825, 0.1093607
        %v1031 = vmul.f32 %v830, 0.1093607
        %v1032 = vmul.f32 %v835, 0.1093607
        %vm1063 = vcmask 1044480
        %v1064 = vrot.slane %v1003, 3
        %v1065 = vrot.slane %v1004, 3
        %v1066 = vsel %vm1063, %v1064, %v1065
        %v1067 = vrot.slane %v1005, 3
        %v1068 = vrot.slane %v1006, 3
        %v1069 = vsel %vm1063, %v1067, %v1068
        %v1070 = vrot.slane %v1007, 3
        %v1071 = vrot.slane %v1008, 3
        %v1072 = vsel %vm1063, %v1070, %v1071
        %v1073 = vrot.slane %v1009, 3
        %v1074 = vrot.slane %v1010, 3
        %v1075 = vsel %vm1063, %v1073, %v1074
        %v1076 = vrot.slane %v1011, 3
        %v1077 = vrot.slane %v1012, 3
        %v1078 = vsel %vm1063, %v1076, %v1077
        %v1079 = vrot.slane %v1013, 3
        %v1080 = vrot.slane %v1014, 3
        %v1081 = vsel %vm1063, %v1079, %v1080
        %v1082 = vrot.slane %v1015, 3
        %v1083 = vrot.slane %v1016, 3
        %v1084 = vsel %vm1063, %v1082, %v1083
        %v1085 = vrot.slane %v1017, 3
        %v1086 = vrot.slane %v1018, 3
        %v1087 = vsel %vm1063, %v1085, %v1086
        %v1088 = vrot.slane %v1019, 3
        %v1089 = vrot.slane %v1020, 3
        %v1090 = vsel %vm1063, %v1088, %v1089
        %v1091 = vrot.slane %v1021, 3
        %v1092 = vrot.slane %v1022, 3
        %v1093 = vsel %vm1063, %v1091, %v1092
        %v1094 = vrot.slane %v1023, 3
        %v1095 = vrot.slane %v1024, 3
        %v1096 = vsel %vm1063, %v1094, %v1095
        %v1097 = vrot.slane %v1025, 3
        %v1098 = vrot.slane %v1026, 3
        %v1099 = vsel %vm1063, %v1097, %v1098
        %v1100 = vrot.slane %v1027, 3
        %v1101 = vrot.slane %v1028, 3
        %v1102 = vsel %vm1063, %v1100, %v1101
        %v1103 = vrot.slane %v1029, 3
        %v1104 = vrot.slane %v1030, 3
        %v1105 = vsel %vm1063, %v1103, %v1104
        %v1106 = vrot.slane %v1031, 3
        %v1107 = vrot.slane %v1032, 3
        %v1108 = vsel %vm1063, %v1106, %v1107
        %v1124 = vadd.f32 %v988, %v1066
        %v1125 = vadd.f32 %v989, %v1069
        %v1126 = vadd.f32 %v990, %v1072
        %v1127 = vadd.f32 %v991, %v1075
        %v1128 = vadd.f32 %v992, %v1078
        %v1129 = vadd.f32 %v993, %v1081
        %v1130 = vadd.f32 %v994, %v1084
        %v1131 = vadd.f32 %v995, %v1087
        %v1132 = vadd.f32 %v996, %v1090
        %v1133 = vadd.f32 %v997, %v1093
        %v1134 = vadd.f32 %v998, %v1096
        %v1135 = vadd.f32 %v999, %v1099
        %v1136 = vadd.f32 %v1000, %v1102
        %v1137 = vadd.f32 %v1001, %v1105
        %v1138 = vadd.f32 %v1002, %v1108
        %v1139 = vmul.f32 %v690, 0.21300554
        %v1140 = vmul.f32 %v695, 0.21300554
        %v1141 = vmul.f32 %v700, 0.21300554
        %v1142 = vmul.f32 %v705, 0.21300554
        %v1143 = vmul.f32 %v710, 0.21300554
        %v1144 = vmul.f32 %v715, 0.21300554
        %v1145 = vmul.f32 %v720, 0.21300554
        %v1146 = vmul.f32 %v725, 0.21300554
        %v1147 = vmul.f32 %v730, 0.21300554
        %v1148 = vmul.f32 %v735, 0.21300554
        %v1149 = vmul.f32 %v740, 0.21300554
        %v1150 = vmul.f32 %v745, 0.21300554
        %v1151 = vmul.f32 %v750, 0.21300554
        %v1152 = vmul.f32 %v755, 0.21300554
        %v1153 = vmul.f32 %v760, 0.21300554
        %v1154 = vmul.f32 %v765, 0.21300554
        %v1155 = vmul.f32 %v770, 0.21300554
        %v1156 = vmul.f32 %v775, 0.21300554
        %v1157 = vmul.f32 %v780, 0.21300554
        %v1158 = vmul.f32 %v785, 0.21300554
        %v1159 = vmul.f32 %v790, 0.21300554
        %v1160 = vmul.f32 %v795, 0.21300554
        %v1161 = vmul.f32 %v800, 0.21300554
        %v1162 = vmul.f32 %v805, 0.21300554
        %v1163 = vmul.f32 %v810, 0.21300554
        %v1164 = vmul.f32 %v815, 0.21300554
        %v1165 = vmul.f32 %v820, 0.21300554
        %v1166 = vmul.f32 %v825, 0.21300554
        %v1167 = vmul.f32 %v830, 0.21300554
        %v1168 = vmul.f32 %v835, 0.21300554
        %vm1199 = vcmask 1043456
        %v1200 = vrot.slane %v1139, 4
        %v1201 = vrot.slane %v1140, 4
        %v1202 = vsel %vm1199, %v1200, %v1201
        %v1203 = vrot.slane %v1141, 4
        %v1204 = vrot.slane %v1142, 4
        %v1205 = vsel %vm1199, %v1203, %v1204
        %v1206 = vrot.slane %v1143, 4
        %v1207 = vrot.slane %v1144, 4
        %v1208 = vsel %vm1199, %v1206, %v1207
        %v1209 = vrot.slane %v1145, 4
        %v1210 = vrot.slane %v1146, 4
        %v1211 = vsel %vm1199, %v1209, %v1210
        %v1212 = vrot.slane %v1147, 4
        %v1213 = vrot.slane %v1148, 4
        %v1214 = vsel %vm1199, %v1212, %v1213
        %v1215 = vrot.slane %v1149, 4
        %v1216 = vrot.slane %v1150, 4
        %v1217 = vsel %vm1199, %v1215, %v1216
        %v1218 = vrot.slane %v1151, 4
        %v1219 = vrot.slane %v1152, 4
        %v1220 = vsel %vm1199, %v1218, %v1219
        %v1221 = vrot.slane %v1153, 4
        %v1222 = vrot.slane %v1154, 4
        %v1223 = vsel %vm1199, %v1221, %v1222
        %v1224 = vrot.slane %v1155, 4
        %v1225 = vrot.slane %v1156, 4
        %v1226 = vsel %vm1199, %v1224, %v1225
        %v1227 = vrot.slane %v1157, 4
        %v1228 = vrot.slane %v1158, 4
        %v1229 = vsel %vm1199, %v1227, %v1228
        %v1230 = vrot.slane %v1159, 4
        %v1231 = vrot.slane %v1160, 4
        %v1232 = vsel %vm1199, %v1230, %v1231
        %v1233 = vrot.slane %v1161, 4
        %v1234 = vrot.slane %v1162, 4
        %v1235 = vsel %vm1199, %v1233, %v1234
        %v1236 = vrot.slane %v1163, 4
        %v1237 = vrot.slane %v1164, 4
        %v1238 = vsel %vm1199, %v1236, %v1237
        %v1239 = vrot.slane %v1165, 4
        %v1240 = vrot.slane %v1166, 4
        %v1241 = vsel %vm1199, %v1239, %v1240
        %v1242 = vrot.slane %v1167, 4
        %v1243 = vrot.slane %v1168, 4
        %v1244 = vsel %vm1199, %v1242, %v1243
        %v1260 = vadd.f32 %v1124, %v1202
        %v1261 = vadd.f32 %v1125, %v1205
        %v1262 = vadd.f32 %v1126, %v1208
        %v1263 = vadd.f32 %v1127, %v1211
        %v1264 = vadd.f32 %v1128, %v1214
        %v1265 = vadd.f32 %v1129, %v1217
        %v1266 = vadd.f32 %v1130, %v1220
        %v1267 = vadd.f32 %v1131, %v1223
        %v1268 = vadd.f32 %v1132, %v1226
        %v1269 = vadd.f32 %v1133, %v1229
        %v1270 = vadd.f32 %v1134, %v1232
        %v1271 = vadd.f32 %v1135, %v1235
        %v1272 = vadd.f32 %v1136, %v1238
        %v1273 = vadd.f32 %v1137, %v1241
        %v1274 = vadd.f32 %v1138, %v1244
        %v1275 = vmul.f32 %v690, 0.26601174
        %v1276 = vmul.f32 %v695, 0.26601174
        %v1277 = vmul.f32 %v700, 0.26601174
        %v1278 = vmul.f32 %v705, 0.26601174
        %v1279 = vmul.f32 %v710, 0.26601174
        %v1280 = vmul.f32 %v715, 0.26601174
        %v1281 = vmul.f32 %v720, 0.26601174
        %v1282 = vmul.f32 %v725, 0.26601174
        %v1283 = vmul.f32 %v730, 0.26601174
        %v1284 = vmul.f32 %v735, 0.26601174
        %v1285 = vmul.f32 %v740, 0.26601174
        %v1286 = vmul.f32 %v745, 0.26601174
        %v1287 = vmul.f32 %v750, 0.26601174
        %v1288 = vmul.f32 %v755, 0.26601174
        %v1289 = vmul.f32 %v760, 0.26601174
        %v1290 = vmul.f32 %v765, 0.26601174
        %v1291 = vmul.f32 %v770, 0.26601174
        %v1292 = vmul.f32 %v775, 0.26601174
        %v1293 = vmul.f32 %v780, 0.26601174
        %v1294 = vmul.f32 %v785, 0.26601174
        %v1295 = vmul.f32 %v790, 0.26601174
        %v1296 = vmul.f32 %v795, 0.26601174
        %v1297 = vmul.f32 %v800, 0.26601174
        %v1298 = vmul.f32 %v805, 0.26601174
        %v1299 = vmul.f32 %v810, 0.26601174
        %v1300 = vmul.f32 %v815, 0.26601174
        %v1301 = vmul.f32 %v820, 0.26601174
        %v1302 = vmul.f32 %v825, 0.26601174
        %v1303 = vmul.f32 %v830, 0.26601174
        %v1304 = vmul.f32 %v835, 0.26601174
        %vm1335 = vcmask 1042432
        %v1336 = vrot.slane %v1275, 5
        %v1337 = vrot.slane %v1276, 5
        %v1338 = vsel %vm1335, %v1336, %v1337
        %v1339 = vrot.slane %v1277, 5
        %v1340 = vrot.slane %v1278, 5
        %v1341 = vsel %vm1335, %v1339, %v1340
        %v1342 = vrot.slane %v1279, 5
        %v1343 = vrot.slane %v1280, 5
        %v1344 = vsel %vm1335, %v1342, %v1343
        %v1345 = vrot.slane %v1281, 5
        %v1346 = vrot.slane %v1282, 5
        %v1347 = vsel %vm1335, %v1345, %v1346
        %v1348 = vrot.slane %v1283, 5
        %v1349 = vrot.slane %v1284, 5
        %v1350 = vsel %vm1335, %v1348, %v1349
        %v1351 = vrot.slane %v1285, 5
        %v1352 = vrot.slane %v1286, 5
        %v1353 = vsel %vm1335, %v1351, %v1352
        %v1354 = vrot.slane %v1287, 5
        %v1355 = vrot.slane %v1288, 5
        %v1356 = vsel %vm1335, %v1354, %v1355
        %v1357 = vrot.slane %v1289, 5
        %v1358 = vrot.slane %v1290, 5
        %v1359 = vsel %vm1335, %v1357, %v1358
        %v1360 = vrot.slane %v1291, 5
        %v1361 = vrot.slane %v1292, 5
        %v1362 = vsel %vm1335, %v1360, %v1361
        %v1363 = vrot.slane %v1293, 5
        %v1364 = vrot.slane %v1294, 5
        %v1365 = vsel %vm1335, %v1363, %v1364
        %v1366 = vrot.slane %v1295, 5
        %v1367 = vrot.slane %v1296, 5
        %v1368 = vsel %vm1335, %v1366, %v1367
        %v1369 = vrot.slane %v1297, 5
        %v1370 = vrot.slane %v1298, 5
        %v1371 = vsel %vm1335, %v1369, %v1370
        %v1372 = vrot.slane %v1299, 5
        %v1373 = vrot.slane %v1300, 5
        %v1374 = vsel %vm1335, %v1372, %v1373
        %v1375 = vrot.slane %v1301, 5
        %v1376 = vrot.slane %v1302, 5
        %v1377 = vsel %vm1335, %v1375, %v1376
        %v1378 = vrot.slane %v1303, 5
        %v1379 = vrot.slane %v1304, 5
        %v1380 = vsel %vm1335, %v1378, %v1379
        %v1396 = vadd.f32 %v1260, %v1338
        %v1397 = vadd.f32 %v1261, %v1341
        %v1398 = vadd.f32 %v1262, %v1344
        %v1399 = vadd.f32 %v1263, %v1347
        %v1400 = vadd.f32 %v1264, %v1350
        %v1401 = vadd.f32 %v1265, %v1353
        %v1402 = vadd.f32 %v1266, %v1356
        %v1403 = vadd.f32 %v1267, %v1359
        %v1404 = vadd.f32 %v1268, %v1362
        %v1405 = vadd.f32 %v1269, %v1365
        %v1406 = vadd.f32 %v1270, %v1368
        %v1407 = vadd.f32 %v1271, %v1371
        %v1408 = vadd.f32 %v1272, %v1374
        %v1409 = vadd.f32 %v1273, %v1377
        %v1410 = vadd.f32 %v1274, %v1380
        %vm1411 = vcmask 1041408
        %v1412 = vrot.slane %v1139, 6
        %v1413 = vrot.slane %v1140, 6
        %v1414 = vsel %vm1411, %v1412, %v1413
        %v1415 = vrot.slane %v1141, 6
        %v1416 = vrot.slane %v1142, 6
        %v1417 = vsel %vm1411, %v1415, %v1416
        %v1418 = vrot.slane %v1143, 6
        %v1419 = vrot.slane %v1144, 6
        %v1420 = vsel %vm1411, %v1418, %v1419
        %v1421 = vrot.slane %v1145, 6
        %v1422 = vrot.slane %v1146, 6
        %v1423 = vsel %vm1411, %v1421, %v1422
        %v1424 = vrot.slane %v1147, 6
        %v1425 = vrot.slane %v1148, 6
        %v1426 = vsel %vm1411, %v1424, %v1425
        %v1427 = vrot.slane %v1149, 6
        %v1428 = vrot.slane %v1150, 6
        %v1429 = vsel %vm1411, %v1427, %v1428
        %v1430 = vrot.slane %v1151, 6
        %v1431 = vrot.slane %v1152, 6
        %v1432 = vsel %vm1411, %v1430, %v1431
        %v1433 = vrot.slane %v1153, 6
        %v1434 = vrot.slane %v1154, 6
        %v1435 = vsel %vm1411, %v1433, %v1434
        %v1436 = vrot.slane %v1155, 6
        %v1437 = vrot.slane %v1156, 6
        %v1438 = vsel %vm1411, %v1436, %v1437
        %v1439 = vrot.slane %v1157, 6
        %v1440 = vrot.slane %v1158, 6
        %v1441 = vsel %vm1411, %v1439, %v1440
        %v1442 = vrot.slane %v1159, 6
        %v1443 = vrot.slane %v1160, 6
        %v1444 = vsel %vm1411, %v1442, %v1443
        %v1445 = vrot.slane %v1161, 6
        %v1446 = vrot.slane %v1162, 6
        %v1447 = vsel %vm1411, %v1445, %v1446
        %v1448 = vrot.slane %v1163, 6
        %v1449 = vrot.slane %v1164, 6
        %v1450 = vsel %vm1411, %v1448, %v1449
        %v1451 = vrot.slane %v1165, 6
        %v1452 = vrot.slane %v1166, 6
        %v1453 = vsel %vm1411, %v1451, %v1452
        %v1454 = vrot.slane %v1167, 6
        %v1455 = vrot.slane %v1168, 6
        %v1456 = vsel %vm1411, %v1454, %v1455
        %v1472 = vadd.f32 %v1396, %v1414
        %v1473 = vadd.f32 %v1397, %v1417
        %v1474 = vadd.f32 %v1398, %v1420
        %v1475 = vadd.f32 %v1399, %v1423
        %v1476 = vadd.f32 %v1400, %v1426
        %v1477 = vadd.f32 %v1401, %v1429
        %v1478 = vadd.f32 %v1402, %v1432
        %v1479 = vadd.f32 %v1403, %v1435
        %v1480 = vadd.f32 %v1404, %v1438
        %v1481 = vadd.f32 %v1405, %v1441
        %v1482 = vadd.f32 %v1406, %v1444
        %v1483 = vadd.f32 %v1407, %v1447
        %v1484 = vadd.f32 %v1408, %v1450
        %v1485 = vadd.f32 %v1409, %v1453
        %v1486 = vadd.f32 %v1410, %v1456
        %vm1487 = vcmask 1040384
        %v1488 = vrot.slane %v1003, 7
        %v1489 = vrot.slane %v1004, 7
        %v1490 = vsel %vm1487, %v1488, %v1489
        %v1491 = vrot.slane %v1005, 7
        %v1492 = vrot.slane %v1006, 7
        %v1493 = vsel %vm1487, %v1491, %v1492
        %v1494 = vrot.slane %v1007, 7
        %v1495 = vrot.slane %v1008, 7
        %v1496 = vsel %vm1487, %v1494, %v1495
        %v1497 = vrot.slane %v1009, 7
        %v1498 = vrot.slane %v1010, 7
        %v1499 = vsel %vm1487, %v1497, %v1498
        %v1500 = vrot.slane %v1011, 7
        %v1501 = vrot.slane %v1012, 7
        %v1502 = vsel %vm1487, %v1500, %v1501
        %v1503 = vrot.slane %v1013, 7
        %v1504 = vrot.slane %v1014, 7
        %v1505 = vsel %vm1487, %v1503, %v1504
        %v1506 = vrot.slane %v1015, 7
        %v1507 = vrot.slane %v1016, 7
        %v1508 = vsel %vm1487, %v1506, %v1507
        %v1509 = vrot.slane %v1017, 7
        %v1510 = vrot.slane %v1018, 7
        %v1511 = vsel %vm1487, %v1509, %v1510
        %v1512 = vrot.slane %v1019, 7
        %v1513 = vrot.slane %v1020, 7
        %v1514 = vsel %vm1487, %v1512, %v1513
        %v1515 = vrot.slane %v1021, 7
        %v1516 = vrot.slane %v1022, 7
        %v1517 = vsel %vm1487, %v1515, %v1516
        %v1518 = vrot.slane %v1023, 7
        %v1519 = vrot.slane %v1024, 7
        %v1520 = vsel %vm1487, %v1518, %v1519
        %v1521 = vrot.slane %v1025, 7
        %v1522 = vrot.slane %v1026, 7
        %v1523 = vsel %vm1487, %v1521, %v1522
        %v1524 = vrot.slane %v1027, 7
        %v1525 = vrot.slane %v1028, 7
        %v1526 = vsel %vm1487, %v1524, %v1525
        %v1527 = vrot.slane %v1029, 7
        %v1528 = vrot.slane %v1030, 7
        %v1529 = vsel %vm1487, %v1527, %v1528
        %v1530 = vrot.slane %v1031, 7
        %v1531 = vrot.slane %v1032, 7
        %v1532 = vsel %vm1487, %v1530, %v1531
        %v1548 = vadd.f32 %v1472, %v1490
        %v1549 = vadd.f32 %v1473, %v1493
        %v1550 = vadd.f32 %v1474, %v1496
        %v1551 = vadd.f32 %v1475, %v1499
        %v1552 = vadd.f32 %v1476, %v1502
        %v1553 = vadd.f32 %v1477, %v1505
        %v1554 = vadd.f32 %v1478, %v1508
        %v1555 = vadd.f32 %v1479, %v1511
        %v1556 = vadd.f32 %v1480, %v1514
        %v1557 = vadd.f32 %v1481, %v1517
        %v1558 = vadd.f32 %v1482, %v1520
        %v1559 = vadd.f32 %v1483, %v1523
        %v1560 = vadd.f32 %v1484, %v1526
        %v1561 = vadd.f32 %v1485, %v1529
        %v1562 = vadd.f32 %v1486, %v1532
        %v1563 = vmul.f32 %v695, 0.036000773
        %v1564 = vmul.f32 %v705, 0.036000773
        %v1565 = vmul.f32 %v715, 0.036000773
        %v1566 = vmul.f32 %v725, 0.036000773
        %v1567 = vmul.f32 %v735, 0.036000773
        %v1568 = vmul.f32 %v745, 0.036000773
        %v1569 = vmul.f32 %v755, 0.036000773
        %v1570 = vmul.f32 %v765, 0.036000773
        %v1571 = vmul.f32 %v775, 0.036000773
        %v1572 = vmul.f32 %v785, 0.036000773
        %v1573 = vmul.f32 %v795, 0.036000773
        %v1574 = vmul.f32 %v805, 0.036000773
        %v1575 = vmul.f32 %v815, 0.036000773
        %v1576 = vmul.f32 %v825, 0.036000773
        %v1577 = vmul.f32 %v835, 0.036000773
        %v1578 = vadd.f32 %v1548, %v1563
        %v1579 = vadd.f32 %v1549, %v1564
        %v1580 = vadd.f32 %v1550, %v1565
        %v1581 = vadd.f32 %v1551, %v1566
        %v1582 = vadd.f32 %v1552, %v1567
        %v1583 = vadd.f32 %v1553, %v1568
        %v1584 = vadd.f32 %v1554, %v1569
        %v1585 = vadd.f32 %v1555, %v1570
        %v1586 = vadd.f32 %v1556, %v1571
        %v1587 = vadd.f32 %v1557, %v1572
        %v1588 = vadd.f32 %v1558, %v1573
        %v1589 = vadd.f32 %v1559, %v1574
        %v1590 = vadd.f32 %v1560, %v1575
        %v1591 = vadd.f32 %v1561, %v1576
        %v1592 = vadd.f32 %v1562, %v1577
        %v1593 = vmul.f32 %v695, 0.0075987587
        %v1594 = vmul.f32 %v705, 0.0075987587
        %v1595 = vmul.f32 %v715, 0.0075987587
        %v1596 = vmul.f32 %v725, 0.0075987587
        %v1597 = vmul.f32 %v735, 0.0075987587
        %v1598 = vmul.f32 %v745, 0.0075987587
        %v1599 = vmul.f32 %v755, 0.0075987587
        %v1600 = vmul.f32 %v765, 0.0075987587
        %v1601 = vmul.f32 %v775, 0.0075987587
        %v1602 = vmul.f32 %v785, 0.0075987587
        %v1603 = vmul.f32 %v795, 0.0075987587
        %v1604 = vmul.f32 %v805, 0.0075987587
        %v1605 = vmul.f32 %v815, 0.0075987587
        %v1606 = vmul.f32 %v825, 0.0075987587
        %v1607 = vmul.f32 %v835, 0.0075987587
        %v1623 = vrot.slane %v1593, 1
        %v1624 = vrot.slane %v1594, 1
        %v1625 = vrot.slane %v1595, 1
        %v1626 = vrot.slane %v1596, 1
        %v1627 = vrot.slane %v1597, 1
        %v1628 = vrot.slane %v1598, 1
        %v1629 = vrot.slane %v1599, 1
        %v1630 = vrot.slane %v1600, 1
        %v1631 = vrot.slane %v1601, 1
        %v1632 = vrot.slane %v1602, 1
        %v1633 = vrot.slane %v1603, 1
        %v1634 = vrot.slane %v1604, 1
        %v1635 = vrot.slane %v1605, 1
        %v1636 = vrot.slane %v1606, 1
        %v1637 = vrot.slane %v1607, 1
        %v1653 = vadd.f32 %v1578, %v1623
        %v1654 = vadd.f32 %v1579, %v1624
        %v1655 = vadd.f32 %v1580, %v1625
        %v1656 = vadd.f32 %v1581, %v1626
        %v1657 = vadd.f32 %v1582, %v1627
        %v1658 = vadd.f32 %v1583, %v1628
        %v1659 = vadd.f32 %v1584, %v1629
        %v1660 = vadd.f32 %v1585, %v1630
        %v1661 = vadd.f32 %v1586, %v1631
        %v1662 = vadd.f32 %v1587, %v1632
        %v1663 = vadd.f32 %v1588, %v1633
        %v1664 = vadd.f32 %v1589, %v1634
        %v1665 = vadd.f32 %v1590, %v1635
        %v1666 = vadd.f32 %v1591, %v1636
        %v1667 = vadd.f32 %v1592, %v1637
        %v1668 = vmul.f32 %v695, 0.0010283804
        %v1669 = vmul.f32 %v705, 0.0010283804
        %v1670 = vmul.f32 %v715, 0.0010283804
        %v1671 = vmul.f32 %v725, 0.0010283804
        %v1672 = vmul.f32 %v735, 0.0010283804
        %v1673 = vmul.f32 %v745, 0.0010283804
        %v1674 = vmul.f32 %v755, 0.0010283804
        %v1675 = vmul.f32 %v765, 0.0010283804
        %v1676 = vmul.f32 %v775, 0.0010283804
        %v1677 = vmul.f32 %v785, 0.0010283804
        %v1678 = vmul.f32 %v795, 0.0010283804
        %v1679 = vmul.f32 %v805, 0.0010283804
        %v1680 = vmul.f32 %v815, 0.0010283804
        %v1681 = vmul.f32 %v825, 0.0010283804
        %v1682 = vmul.f32 %v835, 0.0010283804
        %v1698 = vrot.slane %v1668, 2
        %v1699 = vrot.slane %v1669, 2
        %v1700 = vrot.slane %v1670, 2
        %v1701 = vrot.slane %v1671, 2
        %v1702 = vrot.slane %v1672, 2
        %v1703 = vrot.slane %v1673, 2
        %v1704 = vrot.slane %v1674, 2
        %v1705 = vrot.slane %v1675, 2
        %v1706 = vrot.slane %v1676, 2
        %v1707 = vrot.slane %v1677, 2
        %v1708 = vrot.slane %v1678, 2
        %v1709 = vrot.slane %v1679, 2
        %v1710 = vrot.slane %v1680, 2
        %v1711 = vrot.slane %v1681, 2
        %v1712 = vrot.slane %v1682, 2
        %v1728 = vadd.f32 %v1653, %v1698
        %v1729 = vadd.f32 %v1654, %v1699
        %v1730 = vadd.f32 %v1655, %v1700
        %v1731 = vadd.f32 %v1656, %v1701
        %v1732 = vadd.f32 %v1657, %v1702
        %v1733 = vadd.f32 %v1658, %v1703
        %v1734 = vadd.f32 %v1659, %v1704
        %v1735 = vadd.f32 %v1660, %v1705
        %v1736 = vadd.f32 %v1661, %v1706
        %v1737 = vadd.f32 %v1662, %v1707
        %v1738 = vadd.f32 %v1663, %v1708
        %v1739 = vadd.f32 %v1664, %v1709
        %v1740 = vadd.f32 %v1665, %v1710
        %v1741 = vadd.f32 %v1666, %v1711
        %v1742 = vadd.f32 %v1667, %v1712
        %v1743 = vmul.f32 %v1728, %v1728
        %v1744 = vmul.f32 %v1729, %v1729
        %v1745 = vmul.f32 %v1730, %v1730
        %v1746 = vmul.f32 %v1731, %v1731
        %v1747 = vmul.f32 %v1732, %v1732
        %v1748 = vmul.f32 %v1733, %v1733
        %v1749 = vmul.f32 %v1728, %v1731
        %v1750 = vmul.f32 %v1729, %v1732
        %v1751 = vmul.f32 %v1730, %v1733
        %v1752 = vsub.f32 %v1734, %v1743
        %v1753 = vsub.f32 %v1735, %v1744
        %v1754 = vsub.f32 %v1736, %v1745
        %v1755 = vsub.f32 %v1737, %v1746
        %v1756 = vsub.f32 %v1738, %v1747
        %v1757 = vsub.f32 %v1739, %v1748
        %v1758 = vsub.f32 %v1740, %v1749
        %v1759 = vsub.f32 %v1741, %v1750
        %v1760 = vsub.f32 %v1742, %v1751
        %v1761 = vmul.f32 %v1749, 2.0
        %v1762 = vmul.f32 %v1750, 2.0
        %v1763 = vmul.f32 %v1751, 2.0
        %v1764 = vadd.f32 %v1761, 0.0001
        %v1765 = vadd.f32 %v1762, 0.0001
        %v1766 = vadd.f32 %v1763, 0.0001
        %v1767 = vmul.f32 %v1758, 2.0
        %v1768 = vmul.f32 %v1759, 2.0
        %v1769 = vmul.f32 %v1760, 2.0
        %v1770 = vadd.f32 %v1767, 0.0009
        %v1771 = vadd.f32 %v1768, 0.0009
        %v1772 = vadd.f32 %v1769, 0.0009
        %v1773 = vmul.f32 %v1764, %v1770
        %v1774 = vmul.f32 %v1765, %v1771
        %v1775 = vmul.f32 %v1766, %v1772
        %v1776 = vadd.f32 %v1743, %v1746
        %v1777 = vadd.f32 %v1744, %v1747
        %v1778 = vadd.f32 %v1745, %v1748
        %v1779 = vadd.f32 %v1776, 0.0001
        %v1780 = vadd.f32 %v1777, 0.0001
        %v1781 = vadd.f32 %v1778, 0.0001
        %v1782 = vadd.f32 %v1752, %v1755
        %v1783 = vadd.f32 %v1753, %v1756
        %v1784 = vadd.f32 %v1754, %v1757
        %v1785 = vadd.f32 %v1782, 0.0009
        %v1786 = vadd.f32 %v1783, 0.0009
        %v1787 = vadd.f32 %v1784, 0.0009
        %v1788 = vmul.f32 %v1779, %v1785
        %v1789 = vmul.f32 %v1780, %v1786
        %v1790 = vmul.f32 %v1781, %v1787
        %v1791 = vrcp.pop %v1788
        %v1792 = vmul.f32 %v1773, %v1791
        %v1793 = vrcp.pop %v1789
        %v1794 = vmul.f32 %v1774, %v1793
        %v1795 = vrcp.pop %v1790
        %v1796 = vmul.f32 %v1775, %v1795
        %vm1797 = vcmask 46080
        %v1798 = vsel %vm1797, %v1792, 0.0
        %v1799 = vsel %vm1797, %v1794, 0.0
        %v1800 = vadd.f32 %v1798, %v1799
        %v1801 = vsel %vm1797, %v1796, 0.0
        %v1802 = vadd.f32 %v1800, %v1801
        %1803 = vadd.xlane.f32.xlu0 %v1802
        %v1804 = vpop.xlane.xlu0 %1803
        %v1805 = vrot.slane %v1804, 4
        %v1806 = vadd.f32 %v1804, %v1805
        %v1807 = vrot.slane %v1806, 2
        %v1808 = vadd.f32 %v1806, %v1807
        %v1809 = vrot.slane %v1808, 1
        %v1810 = vadd.f32 %v1808, %v1809
        %s1811 = vtos %v1810
        %v1812 = vstv %s1811
        %1813 = vst.msk [vmem:[%s330] sm:$0x1] %vm389, %v1812
        %p1814 = scmp.lt.s32.totalorder %s24, 1
        %s1815 = scalar_select %p1814, %s24, 1
        %s1816 = scalar_lea.vmem %s3, %s1815
        %p1817 = scmp.lt.s32.totalorder %s24, 1
        %s1818 = scalar_select %p1817, %s24, 1
        %s1819 = scalar_lea.vmem %s4, %s1818
        %p1820 = scmp.lt.s32.totalorder %s24, 1
        %s1821 = scalar_select %p1820, %s24, 1
        %s1822 = scalar_lea.vmem %s5, %s1821
        %p1823 = scmp.lt.s32.totalorder %s24, 1
        %s1824 = scalar_select %p1823, %s24, 1
        %s1825 = scalar_lea.vmem %s6, %s1824
        // Predicated region
        $region41: #{_lambda_.1} parent=31 // pred_check
          %p1826 = pneg %p115
        $region42: #{_lambda_.1} parent=31 // pred_check_branch
          %1828 = sbr.rel (%p1826) target = $region44
        $region43: #{_lambda_.1} parent=31 // pred_region
          _
        $region44: #{_lambda_.1} parent=31 // pred_fallthru
          _
        // Predicated region
        $region45: #{_lambda_.1} parent=31 // pred_check
          %p1829 = pneg %p141
        $region46: #{_lambda_.1} parent=31 // pred_check_branch
          %1831 = sbr.rel (%p1829) target = $region48
        $region47: #{_lambda_.1} parent=31 // pred_region
          _
        $region48: #{_lambda_.1} parent=31 // pred_fallthru
          _
        // Predicated region
        $region49: #{_lambda_.1} parent=31 // pred_check
          %p1832 = pneg %p167
        $region50: #{_lambda_.1} parent=31 // pred_check_branch
          %1834 = sbr.rel (%p1832) target = $region52
        $region51: #{_lambda_.1} parent=31 // pred_region
          _
        $region52: #{_lambda_.1} parent=31 // pred_fallthru
          _
        // Predicated region
        $region53: #{_lambda_.1} parent=31 // pred_check
          %p1835 = pneg %p193
        $region54: #{_lambda_.1} parent=31 // pred_check_branch
          %1837 = sbr.rel (%p1835) target = $region56
        $region55: #{_lambda_.1} parent=31 // pred_region
          _
        $region56: #{_lambda_.1} parent=31 // pred_fallthru
          _
      $region32: #{_lambda_.1} parent=5 // pred_fallthru
        _
      %p1838 = scmp.le.s32.totalorder 2, %s19
      // Predicated region
      $region57: #{_lambda_.1} parent=5 // pred_check
        %p1839 = pneg %p1838
      $region58: #{_lambda_.1} parent=5 // pred_check_branch
        %1841 = sbr.rel (%p1839) target = $region60
      $region59: #{_lambda_.1} parent=5 // pred_region
        %s1842 = ssub.s32 %s19, 2
        // Predicated region
        $region61: #{_lambda_.1} parent=59 // pred_check
          %p1843 = pneg %p121
        $region62: #{_lambda_.1} parent=59 // pred_check_branch
          %1845 = sbr.rel (%p1843) target = $region64
        $region63: #{_lambda_.1} parent=59 // pred_region
          %p1846 = scmp.lt.s32.totalorder %s25, 1
          %s1847 = scalar_select %p1846, %s25, 1
          %s1848 = scalar_lea.vmem %s3, %s1847
        $region64: #{_lambda_.1} parent=59 // pred_fallthru
          _
        // Predicated region
        $region65: #{_lambda_.1} parent=59 // pred_check
          %p1849 = pneg %p147
        $region66: #{_lambda_.1} parent=59 // pred_check_branch
          %1851 = sbr.rel (%p1849) target = $region68
        $region67: #{_lambda_.1} parent=59 // pred_region
          %p1852 = scmp.lt.s32.totalorder %s25, 1
          %s1853 = scalar_select %p1852, %s25, 1
          %s1854 = scalar_lea.vmem %s4, %s1853
        $region68: #{_lambda_.1} parent=59 // pred_fallthru
          _
        // Predicated region
        $region69: #{_lambda_.1} parent=59 // pred_check
          %p1855 = pneg %p173
        $region70: #{_lambda_.1} parent=59 // pred_check_branch
          %1857 = sbr.rel (%p1855) target = $region72
        $region71: #{_lambda_.1} parent=59 // pred_region
          %p1858 = scmp.lt.s32.totalorder %s25, 1
          %s1859 = scalar_select %p1858, %s25, 1
          %s1860 = scalar_lea.vmem %s5, %s1859
        $region72: #{_lambda_.1} parent=59 // pred_fallthru
          _
        // Predicated region
        $region73: #{_lambda_.1} parent=59 // pred_check
          %p1861 = pneg %p199
        $region74: #{_lambda_.1} parent=59 // pred_check_branch
          %1863 = sbr.rel (%p1861) target = $region76
        $region75: #{_lambda_.1} parent=59 // pred_region
          %p1864 = scmp.lt.s32.totalorder %s25, 1
          %s1865 = scalar_select %p1864, %s25, 1
          %s1866 = scalar_lea.vmem %s6, %s1865
        $region76: #{_lambda_.1} parent=59 // pred_fallthru
          _
      $region60: #{_lambda_.1} parent=5 // pred_fallthru
        _
    $region6: #{_lambda_.1} parent=1 // loop_footer
      %s23 = sadd.s32 1, %s19
    $region7: #{_lambda_.1} parent=1 // loop_footer_branch
      %18 = sbr.rel target = $region3
    $region8: #{_lambda_.1} parent=1 // loop_exit
      _
    %1867 = vsyncpa [#allocation3], 1
    %s1868 = scalar_lea.sflag [#allocation3], 1
    %1869 = vsyncpa %s1868, 1
    %1870 = vsyncpa [#allocation5], 1
    %s1871 = scalar_lea.sflag [#allocation5], 1
    %1872 = vsyncpa %s1871, 1

</llo_original>
